<compile_context>
chip_gen: v7x
topology: tpu7x:2x2x1
jax: 0.10.0
libtpu: 0.0.40
codegen_flags: <defaults>
</compile_context>

<pallas_src>
import math
from functools import partial

import jax
import jax.numpy as jnp
from jax.experimental import pallas as pl
from jax.experimental.pallas import tpu as pltpu


def _round_up(x, m):
    return ((x + m - 1) // m) * m


# ---------------------------------------------------------------------------
# Fused kernel: x -> [Linear+ReLU+BN]*L -> concat(identity) -> Linear (padded N)
# ---------------------------------------------------------------------------
def _make_fcnet_kernel(num_layers):
    def kernel(*refs):
        x_ref = refs[0]
        layer_refs = refs[1:1 + 4 * num_layers]
        w_out_h_ref, w_out_id_ref, b_out_ref, o_ref = refs[1 + 4 * num_layers:]

        x = x_ref[...]                     # (B, d_in) f32 -- also the skip "identity"
        h = x
        for i in range(num_layers):
            w_ref, b_ref, g_ref, be_ref = layer_refs[4 * i: 4 * i + 4]
            z = jnp.dot(h, w_ref[...], preferred_element_type=jnp.float32) + b_ref[...]
            z = jnp.maximum(z, 0.0)        # ReLU
            # train-mode BatchNorm1d with single-pass batch stats:
            #   var = E[z^2] - E[z]^2 (biased), then one fused scale/shift affine.
            mean = jnp.mean(z, axis=0, keepdims=True)
            var = jnp.mean(z * z, axis=0, keepdims=True) - mean * mean
            inv = jax.lax.rsqrt(var + 1e-5)
            scale = g_ref[...] * inv
            shift = be_ref[...] - mean * scale
            h = z * scale + shift

        # concat([h, identity], 1) @ W_out + b == h @ W_h + identity @ W_id + b
        o_ref[...] = (
            jnp.dot(h, w_out_h_ref[...], preferred_element_type=jnp.float32)
            + jnp.dot(x, w_out_id_ref[...], preferred_element_type=jnp.float32)
            + b_out_ref[...]
        )

    return kernel


# ---------------------------------------------------------------------------
# Parameter construction (mirrors PyTorch defaults)
# ---------------------------------------------------------------------------
def init_fcnet_params(key, data_config, fc_dims):
    """Linear: U(-1/sqrt(fan_in), 1/sqrt(fan_in)) for weight & bias;
    BatchNorm1d: gamma=1, beta=0. Final Linear is pre-split (hidden/identity
    rows) and zero-padded on the class dim to a multiple of 128."""
    input_width = int(math.prod(data_config["input_shape"][1:]))
    num_classes = len(data_config["mapping"])
    dims = [input_width] + list(fc_dims)

    layers = []
    for i in range(len(fc_dims)):
        d_in, d_out = dims[i], dims[i + 1]
        key, kw, kb = jax.random.split(key, 3)
        bound = 1.0 / math.sqrt(d_in)
        w = jax.random.uniform(kw, (d_in, d_out), jnp.float32, -bound, bound)
        b = jax.random.uniform(kb, (d_out,), jnp.float32, -bound, bound)
        gamma = jnp.ones((d_out,), jnp.float32)
        beta = jnp.zeros((d_out,), jnp.float32)
        layers.append((w, b, gamma, beta))

    d_h, d_id = dims[-1], dims[0]
    key, kw, kb = jax.random.split(key, 3)
    bound = 1.0 / math.sqrt(d_h + d_id)
    w_out = jax.random.uniform(kw, (d_h + d_id, num_classes), jnp.float32, -bound, bound)
    b_out = jax.random.uniform(kb, (num_classes,), jnp.float32, -bound, bound)

    n_pad = _round_up(num_classes, 128)
    pad = n_pad - num_classes
    w_out_h = jnp.pad(w_out[:d_h, :], ((0, 0), (0, pad)))    # rows for hidden h
    w_out_id = jnp.pad(w_out[d_h:, :], ((0, 0), (0, pad)))   # rows for identity
    b_out_p = jnp.pad(b_out, ((0, pad),))

    params = {"layers": layers, "out": (w_out_h, w_out_id, b_out_p)}
    return params, num_classes


# ---------------------------------------------------------------------------
# Forward
# ---------------------------------------------------------------------------
@partial(jax.jit, static_argnames=("num_classes",))
def fcnet_forward(params, x, *, num_classes):
    B = x.shape[0]
    x_flat = x.reshape(B, -1).astype(jnp.float32)    # torch.flatten(x, 1)

    layer_params = params["layers"]
    num_layers = len(layer_params)
    w_out_h, w_out_id, b_out_p = params["out"]
    n_pad = w_out_h.shape[1]

    inputs = [x_flat]
    for (w, b, g, be) in layer_params:
        inputs += [w, b.reshape(1, -1), g.reshape(1, -1), be.reshape(1, -1)]
    inputs += [w_out_h, w_out_id, b_out_p.reshape(1, -1)]

    # No grid, whole-array VMEM refs: one launch, all weights resident in VMEM.
    vmem = pl.BlockSpec(memory_space=pltpu.MemorySpace.VMEM)
    out_padded = pl.pallas_call(
        _make_fcnet_kernel(num_layers),
        out_shape=jax.ShapeDtypeStruct((B, n_pad), jnp.float32),
        in_specs=[vmem] * len(inputs),
        out_specs=vmem,
    )(*inputs)

    return out_padded[:, :num_classes]


# ---------------------------------------------------------------------------
# Main
# ---------------------------------------------------------------------------
if __name__ == "__main__":
    data_config = {
        "input_shape": (1, 4, 16, 16),   # per-sample shape convention (C, H, W) after index 0
        "mapping": list(range(10)),      # 10 classes
    }
    fc_dims = [256, 128]

    B = 8  # train-mode BatchNorm1d needs B > 1; 8 = one sublane tile
    key = jax.random.PRNGKey(0)
    kx, kp = jax.random.split(key)
    x = jax.random.normal(kx, (B, 4, 16, 16), dtype=jnp.float32)

    params, num_classes = init_fcnet_params(kp, data_config, fc_dims)

    y = fcnet_forward(params, x, num_classes=num_classes)
    y = jax.block_until_ready(y)

    assert y.shape == (B, num_classes), y.shape
    assert y.dtype == jnp.float32
    print("KERNEL_OK")
</pallas_src>

<mosaic_0001>
module attributes {stable_mosaic.version = 11 : i64} {
  func.func @kernel(%arg0: memref<8x1024xf32, #tpu.memory_space<vmem>>, %arg1: memref<1024x256xf32, #tpu.memory_space<vmem>>, %arg2: memref<1x256xf32, #tpu.memory_space<vmem>>, %arg3: memref<1x256xf32, #tpu.memory_space<vmem>>, %arg4: memref<1x256xf32, #tpu.memory_space<vmem>>, %arg5: memref<256x128xf32, #tpu.memory_space<vmem>>, %arg6: memref<1x128xf32, #tpu.memory_space<vmem>>, %arg7: memref<1x128xf32, #tpu.memory_space<vmem>>, %arg8: memref<1x128xf32, #tpu.memory_space<vmem>>, %arg9: memref<128x128xf32, #tpu.memory_space<vmem>>, %arg10: memref<1024x128xf32, #tpu.memory_space<vmem>>, %arg11: memref<1x128xf32, #tpu.memory_space<vmem>>, %arg12: memref<8x128xf32, #tpu.memory_space<vmem>>) attributes {dimension_semantics = [], scalar_prefetch = 0 : i64, scratch_operands = 0 : i64, tpu.core_type = #tpu.core_type<tc>} {
    %c0 = arith.constant 0 : index
    %c0_0 = arith.constant 0 : index
    %0 = vector.load %arg0[%c0, %c0_0] : memref<8x1024xf32, #tpu.memory_space<vmem>>, vector<8x1024xf32>
    %c0_1 = arith.constant 0 : index
    %c0_2 = arith.constant 0 : index
    %1 = vector.load %arg1[%c0_1, %c0_2] : memref<1024x256xf32, #tpu.memory_space<vmem>>, vector<1024x256xf32>
    %cst = arith.constant dense<0.000000e+00> : vector<8x256xf32>
    %2 = tpu.matmul %0, %1, %cst {dimension_numbers = #tpu.dot_dimension_numbers<[1], [0], [0], [1], [0, 0, 1, 1], [], []>} : vector<8x1024xf32>, vector<1024x256xf32>, vector<8x256xf32> -> vector<8x256xf32>
    %c0_3 = arith.constant 0 : index
    %c0_4 = arith.constant 0 : index
    %3 = vector.load %arg2[%c0_3, %c0_4] : memref<1x256xf32, #tpu.memory_space<vmem>>, vector<1x256xf32>
    %4 = vector.broadcast %3 : vector<1x256xf32> to vector<8x256xf32>
    %5 = arith.addf %2, %4 : vector<8x256xf32>
    %cst_5 = arith.constant 0.000000e+00 : f32
    %6 = vector.broadcast %cst_5 : f32 to vector<8x256xf32>
    %7 = arith.maximumf %5, %6 : vector<8x256xf32>
    %cst_6 = arith.constant dense<0.000000e+00> : vector<256xf32>
    %8 = vector.multi_reduction <add>, %7, %cst_6 [0] : vector<8x256xf32> to vector<256xf32>
    %9 = vector.shape_cast %8 : vector<256xf32> to vector<1x256xf32>
    %cst_7 = arith.constant 8.000000e+00 : f32
    %10 = vector.broadcast %cst_7 : f32 to vector<1x256xf32>
    %11 = arith.divf %9, %10 : vector<1x256xf32>
    %12 = arith.mulf %7, %7 : vector<8x256xf32>
    %cst_8 = arith.constant dense<0.000000e+00> : vector<256xf32>
    %13 = vector.multi_reduction <add>, %12, %cst_8 [0] : vector<8x256xf32> to vector<256xf32>
    %14 = vector.shape_cast %13 : vector<256xf32> to vector<1x256xf32>
    %cst_9 = arith.constant 8.000000e+00 : f32
    %15 = vector.broadcast %cst_9 : f32 to vector<1x256xf32>
    %16 = arith.divf %14, %15 : vector<1x256xf32>
    %17 = arith.mulf %11, %11 : vector<1x256xf32>
    %18 = arith.subf %16, %17 : vector<1x256xf32>
    %cst_10 = arith.constant 9.99999974E-6 : f32
    %19 = vector.broadcast %cst_10 : f32 to vector<1x256xf32>
    %20 = arith.addf %18, %19 : vector<1x256xf32>
    %21 = math.rsqrt %20 : vector<1x256xf32>
    %c0_11 = arith.constant 0 : index
    %c0_12 = arith.constant 0 : index
    %22 = vector.load %arg3[%c0_11, %c0_12] : memref<1x256xf32, #tpu.memory_space<vmem>>, vector<1x256xf32>
    %23 = arith.mulf %22, %21 : vector<1x256xf32>
    %c0_13 = arith.constant 0 : index
    %c0_14 = arith.constant 0 : index
    %24 = vector.load %arg4[%c0_13, %c0_14] : memref<1x256xf32, #tpu.memory_space<vmem>>, vector<1x256xf32>
    %25 = arith.mulf %11, %23 : vector<1x256xf32>
    %26 = arith.subf %24, %25 : vector<1x256xf32>
    %27 = vector.broadcast %23 : vector<1x256xf32> to vector<8x256xf32>
    %28 = arith.mulf %7, %27 : vector<8x256xf32>
    %29 = vector.broadcast %26 : vector<1x256xf32> to vector<8x256xf32>
    %30 = arith.addf %28, %29 : vector<8x256xf32>
    %c0_15 = arith.constant 0 : index
    %c0_16 = arith.constant 0 : index
    %31 = vector.load %arg5[%c0_15, %c0_16] : memref<256x128xf32, #tpu.memory_space<vmem>>, vector<256x128xf32>
    %cst_17 = arith.constant dense<0.000000e+00> : vector<8x128xf32>
    %32 = tpu.matmul %30, %31, %cst_17 {dimension_numbers = #tpu.dot_dimension_numbers<[1], [0], [0], [1], [0, 0, 1, 1], [], []>} : vector<8x256xf32>, vector<256x128xf32>, vector<8x128xf32> -> vector<8x128xf32>
    %c0_18 = arith.constant 0 : index
    %c0_19 = arith.constant 0 : index
    %33 = vector.load %arg6[%c0_18, %c0_19] : memref<1x128xf32, #tpu.memory_space<vmem>>, vector<1x128xf32>
    %34 = vector.broadcast %33 : vector<1x128xf32> to vector<8x128xf32>
    %35 = arith.addf %32, %34 : vector<8x128xf32>
    %cst_20 = arith.constant 0.000000e+00 : f32
    %36 = vector.broadcast %cst_20 : f32 to vector<8x128xf32>
    %37 = arith.maximumf %35, %36 : vector<8x128xf32>
    %cst_21 = arith.constant dense<0.000000e+00> : vector<128xf32>
    %38 = vector.multi_reduction <add>, %37, %cst_21 [0] : vector<8x128xf32> to vector<128xf32>
    %39 = vector.shape_cast %38 : vector<128xf32> to vector<1x128xf32>
    %cst_22 = arith.constant 8.000000e+00 : f32
    %40 = vector.broadcast %cst_22 : f32 to vector<1x128xf32>
    %41 = arith.divf %39, %40 : vector<1x128xf32>
    %42 = arith.mulf %37, %37 : vector<8x128xf32>
    %cst_23 = arith.constant dense<0.000000e+00> : vector<128xf32>
    %43 = vector.multi_reduction <add>, %42, %cst_23 [0] : vector<8x128xf32> to vector<128xf32>
    %44 = vector.shape_cast %43 : vector<128xf32> to vector<1x128xf32>
    %cst_24 = arith.constant 8.000000e+00 : f32
    %45 = vector.broadcast %cst_24 : f32 to vector<1x128xf32>
    %46 = arith.divf %44, %45 : vector<1x128xf32>
    %47 = arith.mulf %41, %41 : vector<1x128xf32>
    %48 = arith.subf %46, %47 : vector<1x128xf32>
    %cst_25 = arith.constant 9.99999974E-6 : f32
    %49 = vector.broadcast %cst_25 : f32 to vector<1x128xf32>
    %50 = arith.addf %48, %49 : vector<1x128xf32>
    %51 = math.rsqrt %50 : vector<1x128xf32>
    %c0_26 = arith.constant 0 : index
    %c0_27 = arith.constant 0 : index
    %52 = vector.load %arg7[%c0_26, %c0_27] : memref<1x128xf32, #tpu.memory_space<vmem>>, vector<1x128xf32>
    %53 = arith.mulf %52, %51 : vector<1x128xf32>
    %c0_28 = arith.constant 0 : index
    %c0_29 = arith.constant 0 : index
    %54 = vector.load %arg8[%c0_28, %c0_29] : memref<1x128xf32, #tpu.memory_space<vmem>>, vector<1x128xf32>
    %55 = arith.mulf %41, %53 : vector<1x128xf32>
    %56 = arith.subf %54, %55 : vector<1x128xf32>
    %57 = vector.broadcast %53 : vector<1x128xf32> to vector<8x128xf32>
    %58 = arith.mulf %37, %57 : vector<8x128xf32>
    %59 = vector.broadcast %56 : vector<1x128xf32> to vector<8x128xf32>
    %60 = arith.addf %58, %59 : vector<8x128xf32>
    %c0_30 = arith.constant 0 : index
    %c0_31 = arith.constant 0 : index
    %61 = vector.load %arg9[%c0_30, %c0_31] : memref<128x128xf32, #tpu.memory_space<vmem>>, vector<128x128xf32>
    %cst_32 = arith.constant dense<0.000000e+00> : vector<8x128xf32>
    %62 = tpu.matmul %60, %61, %cst_32 {dimension_numbers = #tpu.dot_dimension_numbers<[1], [0], [0], [1], [0, 0, 1, 1], [], []>} : vector<8x128xf32>, vector<128x128xf32>, vector<8x128xf32> -> vector<8x128xf32>
    %c0_33 = arith.constant 0 : index
    %c0_34 = arith.constant 0 : index
    %63 = vector.load %arg10[%c0_33, %c0_34] : memref<1024x128xf32, #tpu.memory_space<vmem>>, vector<1024x128xf32>
    %cst_35 = arith.constant dense<0.000000e+00> : vector<8x128xf32>
    %64 = tpu.matmul %0, %63, %cst_35 {dimension_numbers = #tpu.dot_dimension_numbers<[1], [0], [0], [1], [0, 0, 1, 1], [], []>} : vector<8x1024xf32>, vector<1024x128xf32>, vector<8x128xf32> -> vector<8x128xf32>
    %65 = arith.addf %62, %64 : vector<8x128xf32>
    %c0_36 = arith.constant 0 : index
    %c0_37 = arith.constant 0 : index
    %66 = vector.load %arg11[%c0_36, %c0_37] : memref<1x128xf32, #tpu.memory_space<vmem>>, vector<1x128xf32>
    %67 = vector.broadcast %66 : vector<1x128xf32> to vector<8x128xf32>
    %68 = arith.addf %65, %67 : vector<8x128xf32>
    %c0_38 = arith.constant 0 : index
    %c0_39 = arith.constant 0 : index
    %69 = vector.load %arg12[%c0_38, %c0_39] : memref<8x128xf32, #tpu.memory_space<vmem>>, vector<8x128xf32>
    tpu.vector_store %arg12[%c0_38, %c0_39], %68 {strides = array<i32>} : memref<8x128xf32, #tpu.memory_space<vmem>>, vector<8x128xf32>,
    return
  }
}

</mosaic_0001>

<llo_original>
// kernel: fcnet_forward.1
$region0: #{fcnet_forward.1}
  #allocation0 [shape = 'u32[]', space=smem, size = 0x4, offset = 0x4, fixed_abs, tag = 'smem constant byte address 0x4 - core index']
  #allocation1 [shape = 'u32[144,128]{1,0:T(1,128)}', space=vmem, size = 0x12000, scoped, tag = 'internal scratch']
  %s0 = inlined_call_operand.vmem [shape: f32[8,1024], index: 0, kind: input, shape index: {}]
  %s1 = inlined_call_operand.hbm [shape: f32[1024,256], index: 1, kind: input, shape index: {}]
  %s2 = inlined_call_operand.vmem [shape: f32[1,256], index: 2, kind: input, shape index: {}]
  %s3 = inlined_call_operand.vmem [shape: f32[1,256], index: 3, kind: input, shape index: {}]
  %s4 = inlined_call_operand.vmem [shape: f32[1,256], index: 4, kind: input, shape index: {}]
  %s5 = inlined_call_operand.vmem [shape: f32[256,128], index: 5, kind: input, shape index: {}]
  %s6 = inlined_call_operand.vmem [shape: f32[1,128], index: 6, kind: input, shape index: {}]
  %s7 = inlined_call_operand.vmem [shape: f32[1,128], index: 7, kind: input, shape index: {}]
  %s8 = inlined_call_operand.vmem [shape: f32[1,128], index: 8, kind: input, shape index: {}]
  %s9 = inlined_call_operand.vmem [shape: f32[128,128], index: 9, kind: input, shape index: {}]
  %s10 = inlined_call_operand.hbm [shape: f32[1024,128], index: 10, kind: input, shape index: {}]
  %s11 = inlined_call_operand.vmem [shape: f32[1,128], index: 11, kind: input, shape index: {}]
  %s12 = inlined_call_operand.hbm [shape: f32[8,128], index: 12, kind: output, shape index: {}]
  %s13 = sld [smem:[#allocation0]]
  $region66: #{fcnet_forward.1} parent=0
    _
  %s15 = ssub.s32 1, %s13
  %s16 = scalar_select 0, %s15, %s13
  $region1: #{fcnet_forward.1} parent=0
    #allocation2 [shape = 'u8[1048576]{0}', space=vmem, size = 0x100000, scoped, tag = 'input window, operand 1, single buffered']
    #allocation3 [shape = 's32[1]{0}', space=sflag, size = 0x4, scoped, tag = 'scoped memory for fcnet_forward.1']
    #allocation4 [shape = 's32[1]{0}', space=sflag, size = 0x4, scoped, tag = 'scoped memory for fcnet_forward.1']
    #allocation5 [shape = 'u8[524288]{0}', space=vmem, size = 0x80000, scoped, tag = 'input window, operand 10, single buffered']
    #allocation6 [shape = 's32[1]{0}', space=sflag, size = 0x4, scoped, tag = 'scoped memory for fcnet_forward.1']
    #allocation7 [shape = 'u8[4096]{0}', space=vmem, size = 0x1000, scoped, tag = 'output window, operand 0, single buffered']
    %17 = vsyncpa [#allocation3], 0
    %18 = vsyncpa [#allocation6], 0
    %19 = vsyncpa [#allocation4], 0
    // Predicated region
    $region2: #{fcnet_forward.1} parent=1 // pred_check
      _
    $region3: #{fcnet_forward.1} parent=1 // pred_check_branch
      %21 = sbr.rel (0) target = $region5
    $region4: #{fcnet_forward.1} parent=1 // pred_region
      _
    $region5: #{fcnet_forward.1} parent=1 // pred_fallthru
      _
    // Predicated region
    $region6: #{fcnet_forward.1} parent=1 // pred_check
      _
    $region7: #{fcnet_forward.1} parent=1 // pred_check_branch
      %23 = sbr.rel (0) target = $region9
    $region8: #{fcnet_forward.1} parent=1 // pred_region
      %s25 = ssub.s32 32768, 32768
      %26 = vsyncadd [#allocation3], %s25
      %s27 = sshll.u32 [#allocation2], 4
      %s28 = int_to_ptr.vmem [resolvable:$true] %s27
      %33 = dma.hbm_to_vmem [thread:$0]  %s1, 32768, %s28, [#allocation3], 256, 256, 16
    $region9: #{fcnet_forward.1} parent=1 // pred_fallthru
      _
    // Predicated region
    $region10: #{fcnet_forward.1} parent=1 // pred_check
      _
    $region11: #{fcnet_forward.1} parent=1 // pred_check_branch
      %35 = sbr.rel (0) target = $region13
    $region12: #{fcnet_forward.1} parent=1 // pred_region
      _
    $region13: #{fcnet_forward.1} parent=1 // pred_fallthru
      _
    // Predicated region
    $region14: #{fcnet_forward.1} parent=1 // pred_check
      _
    $region15: #{fcnet_forward.1} parent=1 // pred_check_branch
      %37 = sbr.rel (0) target = $region17
    $region16: #{fcnet_forward.1} parent=1 // pred_region
      _
    $region17: #{fcnet_forward.1} parent=1 // pred_fallthru
      _
    // Predicated region
    $region18: #{fcnet_forward.1} parent=1 // pred_check
      _
    $region19: #{fcnet_forward.1} parent=1 // pred_check_branch
      %39 = sbr.rel (0) target = $region21
    $region20: #{fcnet_forward.1} parent=1 // pred_region
      _
    $region21: #{fcnet_forward.1} parent=1 // pred_fallthru
      _
    // Predicated region
    $region22: #{fcnet_forward.1} parent=1 // pred_check
      _
    $region23: #{fcnet_forward.1} parent=1 // pred_check_branch
      %41 = sbr.rel (0) target = $region25
    $region24: #{fcnet_forward.1} parent=1 // pred_region
      _
    $region25: #{fcnet_forward.1} parent=1 // pred_fallthru
      _
    // Predicated region
    $region26: #{fcnet_forward.1} parent=1 // pred_check
      _
    $region27: #{fcnet_forward.1} parent=1 // pred_check_branch
      %43 = sbr.rel (0) target = $region29
    $region28: #{fcnet_forward.1} parent=1 // pred_region
      _
    $region29: #{fcnet_forward.1} parent=1 // pred_fallthru
      _
    // Predicated region
    $region30: #{fcnet_forward.1} parent=1 // pred_check
      _
    $region31: #{fcnet_forward.1} parent=1 // pred_check_branch
      %45 = sbr.rel (0) target = $region33
    $region32: #{fcnet_forward.1} parent=1 // pred_region
      _
    $region33: #{fcnet_forward.1} parent=1 // pred_fallthru
      _
    // Predicated region
    $region34: #{fcnet_forward.1} parent=1 // pred_check
      _
    $region35: #{fcnet_forward.1} parent=1 // pred_check_branch
      %47 = sbr.rel (0) target = $region37
    $region36: #{fcnet_forward.1} parent=1 // pred_region
      _
    $region37: #{fcnet_forward.1} parent=1 // pred_fallthru
      _
    // Predicated region
    $region38: #{fcnet_forward.1} parent=1 // pred_check
      _
    $region39: #{fcnet_forward.1} parent=1 // pred_check_branch
      %49 = sbr.rel (0) target = $region41
    $region40: #{fcnet_forward.1} parent=1 // pred_region
      _
    $region41: #{fcnet_forward.1} parent=1 // pred_fallthru
      _
    // Predicated region
    $region42: #{fcnet_forward.1} parent=1 // pred_check
      _
    $region43: #{fcnet_forward.1} parent=1 // pred_check_branch
      %51 = sbr.rel (0) target = $region45
    $region44: #{fcnet_forward.1} parent=1 // pred_region
      %s53 = ssub.s32 16384, 16384
      %54 = vsyncadd [#allocation6], %s53
      %s55 = sshll.u32 [#allocation5], 4
      %s56 = int_to_ptr.vmem [resolvable:$true] %s55
      %61 = dma.hbm_to_vmem [thread:$0]  %s10, 16384, %s56, [#allocation6], 128, 128, 8
    $region45: #{fcnet_forward.1} parent=1 // pred_fallthru
      _
    // Predicated region
    $region46: #{fcnet_forward.1} parent=1 // pred_check
      _
    $region47: #{fcnet_forward.1} parent=1 // pred_check_branch
      %63 = sbr.rel (0) target = $region49
    $region48: #{fcnet_forward.1} parent=1 // pred_region
      _
    $region49: #{fcnet_forward.1} parent=1 // pred_fallthru
      _
    // Predicated region
    $region50: #{fcnet_forward.1} parent=1 // pred_check
      _
    $region51: #{fcnet_forward.1} parent=1 // pred_check_branch
      %65 = sbr.rel (0) target = $region53
    $region52: #{fcnet_forward.1} parent=1 // pred_region
      %66 = dma.done [#allocation3], 32768
    $region53: #{fcnet_forward.1} parent=1 // pred_fallthru
      _
    // Predicated region
    $region54: #{fcnet_forward.1} parent=1 // pred_check
      _
    $region55: #{fcnet_forward.1} parent=1 // pred_check_branch
      %68 = sbr.rel (0) target = $region57
    $region56: #{fcnet_forward.1} parent=1 // pred_region
      %69 = dma.done [#allocation6], 16384
    $region57: #{fcnet_forward.1} parent=1 // pred_fallthru
      _
    %v70 = vld [vmem:[%s0] sm:$0xff]
    %v71 = vld [vmem:[%s0 + $0x8] sm:$0xff]
    %v72 = vld [vmem:[%s0 + $0x10] sm:$0xff]
    %v73 = vld [vmem:[%s0 + $0x18] sm:$0xff]
    %v74 = vld [vmem:[%s0 + $0x20] sm:$0xff]
    %v75 = vld [vmem:[%s0 + $0x28] sm:$0xff]
    %v76 = vld [vmem:[%s0 + $0x30] sm:$0xff]
    %v77 = vld [vmem:[%s0 + $0x38] sm:$0xff]
    %v78 = vld [vmem:[#allocation2] sm:$0xff]
    %v79 = vld [vmem:[#allocation2 + $0x8] sm:$0xff]
    %v80 = vld [vmem:[#allocation2 + $0x10] sm:$0xff]
    %v81 = vld [vmem:[#allocation2 + $0x18] sm:$0xff]
    %v82 = vld [vmem:[#allocation2 + $0x20] sm:$0xff]
    %v83 = vld [vmem:[#allocation2 + $0x28] sm:$0xff]
    %v84 = vld [vmem:[#allocation2 + $0x30] sm:$0xff]
    %v85 = vld [vmem:[#allocation2 + $0x38] sm:$0xff]
    %v86 = vld [vmem:[#allocation2 + $0x40] sm:$0xff]
    %v87 = vld [vmem:[#allocation2 + $0x48] sm:$0xff]
    %v88 = vld [vmem:[#allocation2 + $0x50] sm:$0xff]
    %v89 = vld [vmem:[#allocation2 + $0x58] sm:$0xff]
    %v90 = vld [vmem:[#allocation2 + $0x60] sm:$0xff]
    %v91 = vld [vmem:[#allocation2 + $0x68] sm:$0xff]
    %v92 = vld [vmem:[#allocation2 + $0x70] sm:$0xff]
    %v93 = vld [vmem:[#allocation2 + $0x78] sm:$0xff]
    %v94 = vld [vmem:[#allocation2 + $0x80] sm:$0xff]
    %v95 = vld [vmem:[#allocation2 + $0x88] sm:$0xff]
    %v96 = vld [vmem:[#allocation2 + $0x90] sm:$0xff]
    %v97 = vld [vmem:[#allocation2 + $0x98] sm:$0xff]
    %v98 = vld [vmem:[#allocation2 + $0xa0] sm:$0xff]
    %v99 = vld [vmem:[#allocation2 + $0xa8] sm:$0xff]
    %v100 = vld [vmem:[#allocation2 + $0xb0] sm:$0xff]
    %v101 = vld [vmem:[#allocation2 + $0xb8] sm:$0xff]
    %v102 = vld [vmem:[#allocation2 + $0xc0] sm:$0xff]
    %v103 = vld [vmem:[#allocation2 + $0xc8] sm:$0xff]
    %v104 = vld [vmem:[#allocation2 + $0xd0] sm:$0xff]
    %v105 = vld [vmem:[#allocation2 + $0xd8] sm:$0xff]
    %v106 = vld [vmem:[#allocation2 + $0xe0] sm:$0xff]
    %v107 = vld [vmem:[#allocation2 + $0xe8] sm:$0xff]
    %v108 = vld [vmem:[#allocation2 + $0xf0] sm:$0xff]
    %v109 = vld [vmem:[#allocation2 + $0xf8] sm:$0xff]
    %v110 = vld [vmem:[#allocation2 + $0x100] sm:$0xff]
    %v111 = vld [vmem:[#allocation2 + $0x108] sm:$0xff]
    %v112 = vld [vmem:[#allocation2 + $0x110] sm:$0xff]
    %v113 = vld [vmem:[#allocation2 + $0x118] sm:$0xff]
    %v114 = vld [vmem:[#allocation2 + $0x120] sm:$0xff]
    %v115 = vld [vmem:[#allocation2 + $0x128] sm:$0xff]
    %v116 = vld [vmem:[#allocation2 + $0x130] sm:$0xff]
    %v117 = vld [vmem:[#allocation2 + $0x138] sm:$0xff]
    %v118 = vld [vmem:[#allocation2 + $0x140] sm:$0xff]
    %v119 = vld [vmem:[#allocation2 + $0x148] sm:$0xff]
    %v120 = vld [vmem:[#allocation2 + $0x150] sm:$0xff]
    %v121 = vld [vmem:[#allocation2 + $0x158] sm:$0xff]
    %v122 = vld [vmem:[#allocation2 + $0x160] sm:$0xff]
    %v123 = vld [vmem:[#allocation2 + $0x168] sm:$0xff]
    %v124 = vld [vmem:[#allocation2 + $0x170] sm:$0xff]
    %v125 = vld [vmem:[#allocation2 + $0x178] sm:$0xff]
    %v126 = vld [vmem:[#allocation2 + $0x180] sm:$0xff]
    %v127 = vld [vmem:[#allocation2 + $0x188] sm:$0xff]
    %v128 = vld [vmem:[#allocation2 + $0x190] sm:$0xff]
    %v129 = vld [vmem:[#allocation2 + $0x198] sm:$0xff]
    %v130 = vld [vmem:[#allocation2 + $0x1a0] sm:$0xff]
    %v131 = vld [vmem:[#allocation2 + $0x1a8] sm:$0xff]
    %v132 = vld [vmem:[#allocation2 + $0x1b0] sm:$0xff]
    %v133 = vld [vmem:[#allocation2 + $0x1b8] sm:$0xff]
    %v134 = vld [vmem:[#allocation2 + $0x1c0] sm:$0xff]
    %v135 = vld [vmem:[#allocation2 + $0x1c8] sm:$0xff]
    %v136 = vld [vmem:[#allocation2 + $0x1d0] sm:$0xff]
    %v137 = vld [vmem:[#allocation2 + $0x1d8] sm:$0xff]
    %v138 = vld [vmem:[#allocation2 + $0x1e0] sm:$0xff]
    %v139 = vld [vmem:[#allocation2 + $0x1e8] sm:$0xff]
    %v140 = vld [vmem:[#allocation2 + $0x1f0] sm:$0xff]
    %v141 = vld [vmem:[#allocation2 + $0x1f8] sm:$0xff]
    %v142 = vld [vmem:[#allocation2 + $0x200] sm:$0xff]
    %v143 = vld [vmem:[#allocation2 + $0x208] sm:$0xff]
    %v144 = vld [vmem:[#allocation2 + $0x210] sm:$0xff]
    %v145 = vld [vmem:[#allocation2 + $0x218] sm:$0xff]
    %v146 = vld [vmem:[#allocation2 + $0x220] sm:$0xff]
    %v147 = vld [vmem:[#allocation2 + $0x228] sm:$0xff]
    %v148 = vld [vmem:[#allocation2 + $0x230] sm:$0xff]
    %v149 = vld [vmem:[#allocation2 + $0x238] sm:$0xff]
    %v150 = vld [vmem:[#allocation2 + $0x240] sm:$0xff]
    %v151 = vld [vmem:[#allocation2 + $0x248] sm:$0xff]
    %v152 = vld [vmem:[#allocation2 + $0x250] sm:$0xff]
    %v153 = vld [vmem:[#allocation2 + $0x258] sm:$0xff]
    %v154 = vld [vmem:[#allocation2 + $0x260] sm:$0xff]
    %v155 = vld [vmem:[#allocation2 + $0x268] sm:$0xff]
    %v156 = vld [vmem:[#allocation2 + $0x270] sm:$0xff]
    %v157 = vld [vmem:[#allocation2 + $0x278] sm:$0xff]
    %v158 = vld [vmem:[#allocation2 + $0x280] sm:$0xff]
    %v159 = vld [vmem:[#allocation2 + $0x288] sm:$0xff]
    %v160 = vld [vmem:[#allocation2 + $0x290] sm:$0xff]
    %v161 = vld [vmem:[#allocation2 + $0x298] sm:$0xff]
    %v162 = vld [vmem:[#allocation2 + $0x2a0] sm:$0xff]
    %v163 = vld [vmem:[#allocation2 + $0x2a8] sm:$0xff]
    %v164 = vld [vmem:[#allocation2 + $0x2b0] sm:$0xff]
    %v165 = vld [vmem:[#allocation2 + $0x2b8] sm:$0xff]
    %v166 = vld [vmem:[#allocation2 + $0x2c0] sm:$0xff]
    %v167 = vld [vmem:[#allocation2 + $0x2c8] sm:$0xff]
    %v168 = vld [vmem:[#allocation2 + $0x2d0] sm:$0xff]
    %v169 = vld [vmem:[#allocation2 + $0x2d8] sm:$0xff]
    %v170 = vld [vmem:[#allocation2 + $0x2e0] sm:$0xff]
    %v171 = vld [vmem:[#allocation2 + $0x2e8] sm:$0xff]
    %v172 = vld [vmem:[#allocation2 + $0x2f0] sm:$0xff]
    %v173 = vld [vmem:[#allocation2 + $0x2f8] sm:$0xff]
    %v174 = vld [vmem:[#allocation2 + $0x300] sm:$0xff]
    %v175 = vld [vmem:[#allocation2 + $0x308] sm:$0xff]
    %v176 = vld [vmem:[#allocation2 + $0x310] sm:$0xff]
    %v177 = vld [vmem:[#allocation2 + $0x318] sm:$0xff]
    %v178 = vld [vmem:[#allocation2 + $0x320] sm:$0xff]
    %v179 = vld [vmem:[#allocation2 + $0x328] sm:$0xff]
    %v180 = vld [vmem:[#allocation2 + $0x330] sm:$0xff]
    %v181 = vld [vmem:[#allocation2 + $0x338] sm:$0xff]
    %v182 = vld [vmem:[#allocation2 + $0x340] sm:$0xff]
    %v183 = vld [vmem:[#allocation2 + $0x348] sm:$0xff]
    %v184 = vld [vmem:[#allocation2 + $0x350] sm:$0xff]
    %v185 = vld [vmem:[#allocation2 + $0x358] sm:$0xff]
    %v186 = vld [vmem:[#allocation2 + $0x360] sm:$0xff]
    %v187 = vld [vmem:[#allocation2 + $0x368] sm:$0xff]
    %v188 = vld [vmem:[#allocation2 + $0x370] sm:$0xff]
    %v189 = vld [vmem:[#allocation2 + $0x378] sm:$0xff]
    %v190 = vld [vmem:[#allocation2 + $0x380] sm:$0xff]
    %v191 = vld [vmem:[#allocation2 + $0x388] sm:$0xff]
    %v192 = vld [vmem:[#allocation2 + $0x390] sm:$0xff]
    %v193 = vld [vmem:[#allocation2 + $0x398] sm:$0xff]
    %v194 = vld [vmem:[#allocation2 + $0x3a0] sm:$0xff]
    %v195 = vld [vmem:[#allocation2 + $0x3a8] sm:$0xff]
    %v196 = vld [vmem:[#allocation2 + $0x3b0] sm:$0xff]
    %v197 = vld [vmem:[#allocation2 + $0x3b8] sm:$0xff]
    %v198 = vld [vmem:[#allocation2 + $0x3c0] sm:$0xff]
    %v199 = vld [vmem:[#allocation2 + $0x3c8] sm:$0xff]
    %v200 = vld [vmem:[#allocation2 + $0x3d0] sm:$0xff]
    %v201 = vld [vmem:[#allocation2 + $0x3d8] sm:$0xff]
    %v202 = vld [vmem:[#allocation2 + $0x3e0] sm:$0xff]
    %v203 = vld [vmem:[#allocation2 + $0x3e8] sm:$0xff]
    %v204 = vld [vmem:[#allocation2 + $0x3f0] sm:$0xff]
    %v205 = vld [vmem:[#allocation2 + $0x3f8] sm:$0xff]
    %v206 = vld [vmem:[#allocation2 + $0x400] sm:$0xff]
    %v207 = vld [vmem:[#allocation2 + $0x408] sm:$0xff]
    %v208 = vld [vmem:[#allocation2 + $0x410] sm:$0xff]
    %v209 = vld [vmem:[#allocation2 + $0x418] sm:$0xff]
    %v210 = vld [vmem:[#allocation2 + $0x420] sm:$0xff]
    %v211 = vld [vmem:[#allocation2 + $0x428] sm:$0xff]
    %v212 = vld [vmem:[#allocation2 + $0x430] sm:$0xff]
    %v213 = vld [vmem:[#allocation2 + $0x438] sm:$0xff]
    %v214 = vld [vmem:[#allocation2 + $0x440] sm:$0xff]
    %v215 = vld [vmem:[#allocation2 + $0x448] sm:$0xff]
    %v216 = vld [vmem:[#allocation2 + $0x450] sm:$0xff]
    %v217 = vld [vmem:[#allocation2 + $0x458] sm:$0xff]
    %v218 = vld [vmem:[#allocation2 + $0x460] sm:$0xff]
    %v219 = vld [vmem:[#allocation2 + $0x468] sm:$0xff]
    %v220 = vld [vmem:[#allocation2 + $0x470] sm:$0xff]
    %v221 = vld [vmem:[#allocation2 + $0x478] sm:$0xff]
    %v222 = vld [vmem:[#allocation2 + $0x480] sm:$0xff]
    %v223 = vld [vmem:[#allocation2 + $0x488] sm:$0xff]
    %v224 = vld [vmem:[#allocation2 + $0x490] sm:$0xff]
    %v225 = vld [vmem:[#allocation2 + $0x498] sm:$0xff]
    %v226 = vld [vmem:[#allocation2 + $0x4a0] sm:$0xff]
    %v227 = vld [vmem:[#allocation2 + $0x4a8] sm:$0xff]
    %v228 = vld [vmem:[#allocation2 + $0x4b0] sm:$0xff]
    %v229 = vld [vmem:[#allocation2 + $0x4b8] sm:$0xff]
    %v230 = vld [vmem:[#allocation2 + $0x4c0] sm:$0xff]
    %v231 = vld [vmem:[#allocation2 + $0x4c8] sm:$0xff]
    %v232 = vld [vmem:[#allocation2 + $0x4d0] sm:$0xff]
    %v233 = vld [vmem:[#allocation2 + $0x4d8] sm:$0xff]
    %v234 = vld [vmem:[#allocation2 + $0x4e0] sm:$0xff]
    %v235 = vld [vmem:[#allocation2 + $0x4e8] sm:$0xff]
    %v236 = vld [vmem:[#allocation2 + $0x4f0] sm:$0xff]
    %v237 = vld [vmem:[#allocation2 + $0x4f8] sm:$0xff]
    %v238 = vld [vmem:[#allocation2 + $0x500] sm:$0xff]
    %v239 = vld [vmem:[#allocation2 + $0x508] sm:$0xff]
    %v240 = vld [vmem:[#allocation2 + $0x510] sm:$0xff]
    %v241 = vld [vmem:[#allocation2 + $0x518] sm:$0xff]
    %v242 = vld [vmem:[#allocation2 + $0x520] sm:$0xff]
    %v243 = vld [vmem:[#allocation2 + $0x528] sm:$0xff]
    %v244 = vld [vmem:[#allocation2 + $0x530] sm:$0xff]
    %v245 = vld [vmem:[#allocation2 + $0x538] sm:$0xff]
    %v246 = vld [vmem:[#allocation2 + $0x540] sm:$0xff]
    %v247 = vld [vmem:[#allocation2 + $0x548] sm:$0xff]
    %v248 = vld [vmem:[#allocation2 + $0x550] sm:$0xff]
    %v249 = vld [vmem:[#allocation2 + $0x558] sm:$0xff]
    %v250 = vld [vmem:[#allocation2 + $0x560] sm:$0xff]
    %v251 = vld [vmem:[#allocation2 + $0x568] sm:$0xff]
    %v252 = vld [vmem:[#allocation2 + $0x570] sm:$0xff]
    %v253 = vld [vmem:[#allocation2 + $0x578] sm:$0xff]
    %v254 = vld [vmem:[#allocation2 + $0x580] sm:$0xff]
    %v255 = vld [vmem:[#allocation2 + $0x588] sm:$0xff]
    %v256 = vld [vmem:[#allocation2 + $0x590] sm:$0xff]
    %v257 = vld [vmem:[#allocation2 + $0x598] sm:$0xff]
    %v258 = vld [vmem:[#allocation2 + $0x5a0] sm:$0xff]
    %v259 = vld [vmem:[#allocation2 + $0x5a8] sm:$0xff]
    %v260 = vld [vmem:[#allocation2 + $0x5b0] sm:$0xff]
    %v261 = vld [vmem:[#allocation2 + $0x5b8] sm:$0xff]
    %v262 = vld [vmem:[#allocation2 + $0x5c0] sm:$0xff]
    %v263 = vld [vmem:[#allocation2 + $0x5c8] sm:$0xff]
    %v264 = vld [vmem:[#allocation2 + $0x5d0] sm:$0xff]
    %v265 = vld [vmem:[#allocation2 + $0x5d8] sm:$0xff]
    %v266 = vld [vmem:[#allocation2 + $0x5e0] sm:$0xff]
    %v267 = vld [vmem:[#allocation2 + $0x5e8] sm:$0xff]
    %v268 = vld [vmem:[#allocation2 + $0x5f0] sm:$0xff]
    %v269 = vld [vmem:[#allocation2 + $0x5f8] sm:$0xff]
    %v270 = vld [vmem:[#allocation2 + $0x600] sm:$0xff]
    %v271 = vld [vmem:[#allocation2 + $0x608] sm:$0xff]
    %v272 = vld [vmem:[#allocation2 + $0x610] sm:$0xff]
    %v273 = vld [vmem:[#allocation2 + $0x618] sm:$0xff]
    %v274 = vld [vmem:[#allocation2 + $0x620] sm:$0xff]
    %v275 = vld [vmem:[#allocation2 + $0x628] sm:$0xff]
    %v276 = vld [vmem:[#allocation2 + $0x630] sm:$0xff]
    %v277 = vld [vmem:[#allocation2 + $0x638] sm:$0xff]
    %v278 = vld [vmem:[#allocation2 + $0x640] sm:$0xff]
    %v279 = vld [vmem:[#allocation2 + $0x648] sm:$0xff]
    %v280 = vld [vmem:[#allocation2 + $0x650] sm:$0xff]
    %v281 = vld [vmem:[#allocation2 + $0x658] sm:$0xff]
    %v282 = vld [vmem:[#allocation2 + $0x660] sm:$0xff]
    %v283 = vld [vmem:[#allocation2 + $0x668] sm:$0xff]
    %v284 = vld [vmem:[#allocation2 + $0x670] sm:$0xff]
    %v285 = vld [vmem:[#allocation2 + $0x678] sm:$0xff]
    %v286 = vld [vmem:[#allocation2 + $0x680] sm:$0xff]
    %v287 = vld [vmem:[#allocation2 + $0x688] sm:$0xff]
    %v288 = vld [vmem:[#allocation2 + $0x690] sm:$0xff]
    %v289 = vld [vmem:[#allocation2 + $0x698] sm:$0xff]
    %v290 = vld [vmem:[#allocation2 + $0x6a0] sm:$0xff]
    %v291 = vld [vmem:[#allocation2 + $0x6a8] sm:$0xff]
    %v292 = vld [vmem:[#allocation2 + $0x6b0] sm:$0xff]
    %v293 = vld [vmem:[#allocation2 + $0x6b8] sm:$0xff]
    %v294 = vld [vmem:[#allocation2 + $0x6c0] sm:$0xff]
    %v295 = vld [vmem:[#allocation2 + $0x6c8] sm:$0xff]
    %v296 = vld [vmem:[#allocation2 + $0x6d0] sm:$0xff]
    %v297 = vld [vmem:[#allocation2 + $0x6d8] sm:$0xff]
    %v298 = vld [vmem:[#allocation2 + $0x6e0] sm:$0xff]
    %v299 = vld [vmem:[#allocation2 + $0x6e8] sm:$0xff]
    %v300 = vld [vmem:[#allocation2 + $0x6f0] sm:$0xff]
    %v301 = vld [vmem:[#allocation2 + $0x6f8] sm:$0xff]
    %v302 = vld [vmem:[#allocation2 + $0x700] sm:$0xff]
    %v303 = vld [vmem:[#allocation2 + $0x708] sm:$0xff]
    %v304 = vld [vmem:[#allocation2 + $0x710] sm:$0xff]
    %v305 = vld [vmem:[#allocation2 + $0x718] sm:$0xff]
    %v306 = vld [vmem:[#allocation2 + $0x720] sm:$0xff]
    %v307 = vld [vmem:[#allocation2 + $0x728] sm:$0xff]
    %v308 = vld [vmem:[#allocation2 + $0x730] sm:$0xff]
    %v309 = vld [vmem:[#allocation2 + $0x738] sm:$0xff]
    %v310 = vld [vmem:[#allocation2 + $0x740] sm:$0xff]
    %v311 = vld [vmem:[#allocation2 + $0x748] sm:$0xff]
    %v312 = vld [vmem:[#allocation2 + $0x750] sm:$0xff]
    %v313 = vld [vmem:[#allocation2 + $0x758] sm:$0xff]
    %v314 = vld [vmem:[#allocation2 + $0x760] sm:$0xff]
    %v315 = vld [vmem:[#allocation2 + $0x768] sm:$0xff]
    %v316 = vld [vmem:[#allocation2 + $0x770] sm:$0xff]
    %v317 = vld [vmem:[#allocation2 + $0x778] sm:$0xff]
    %v318 = vld [vmem:[#allocation2 + $0x780] sm:$0xff]
    %v319 = vld [vmem:[#allocation2 + $0x788] sm:$0xff]
    %v320 = vld [vmem:[#allocation2 + $0x790] sm:$0xff]
    %v321 = vld [vmem:[#allocation2 + $0x798] sm:$0xff]
    %v322 = vld [vmem:[#allocation2 + $0x7a0] sm:$0xff]
    %v323 = vld [vmem:[#allocation2 + $0x7a8] sm:$0xff]
    %v324 = vld [vmem:[#allocation2 + $0x7b0] sm:$0xff]
    %v325 = vld [vmem:[#allocation2 + $0x7b8] sm:$0xff]
    %v326 = vld [vmem:[#allocation2 + $0x7c0] sm:$0xff]
    %v327 = vld [vmem:[#allocation2 + $0x7c8] sm:$0xff]
    %v328 = vld [vmem:[#allocation2 + $0x7d0] sm:$0xff]
    %v329 = vld [vmem:[#allocation2 + $0x7d8] sm:$0xff]
    %v330 = vld [vmem:[#allocation2 + $0x7e0] sm:$0xff]
    %v331 = vld [vmem:[#allocation2 + $0x7e8] sm:$0xff]
    %v332 = vld [vmem:[#allocation2 + $0x7f0] sm:$0xff]
    %v333 = vld [vmem:[#allocation2 + $0x7f8] sm:$0xff]
    %v334 = vld [vmem:[%s2] sm:$0x3]
    %v336 = vlaneseq
    %v337 = vshrl.u32 %v336, 7
    %v338 = vsub.s32 0, %v337
    %v339 = vrot.slane %v334, %v338
    %v340 = vlaneseq
    %v341 = vshrl.u32 %v340, 7
    %v342 = vsub.s32 1, %v341
    %v343 = vrot.slane %v334, %v342
    %346 = vmatprep.subr.mxu0 %v79
    %347 = vmatpush1.msra.mxu0 %v78
    %348 = vmatprep.subr.mxu0 %v81
    %349 = vmatpush1.msra.mxu0 %v80
    %350 = vmatprep.subr.mxu0 %v83
    %351 = vmatpush1.msra.mxu0 %v82
    %352 = vmatprep.subr.mxu0 %v85
    %353 = vmatpush1.msra.mxu0 %v84
    %354 = vmatprep.subr.mxu0 %v87
    %355 = vmatpush1.msra.mxu0 %v86
    %356 = vmatprep.subr.mxu0 %v89
    %357 = vmatpush1.msra.mxu0 %v88
    %358 = vmatprep.subr.mxu0 %v91
    %359 = vmatpush1.msra.mxu0 %v90
    %360 = vmatprep.subr.mxu0 %v93
    %361 = vmatpush1.msra.mxu0 %v92
    %362 = vmatprep.subr.mxu0 %v95
    %363 = vmatpush1.msra.mxu0 %v94
    %364 = vmatprep.subr.mxu0 %v97
    %365 = vmatpush1.msra.mxu0 %v96
    %366 = vmatprep.subr.mxu0 %v99
    %367 = vmatpush1.msra.mxu0 %v98
    %368 = vmatprep.subr.mxu0 %v101
    %369 = vmatpush1.msra.mxu0 %v100
    %370 = vmatprep.subr.mxu0 %v103
    %371 = vmatpush1.msra.mxu0 %v102
    %372 = vmatprep.subr.mxu0 %v105
    %373 = vmatpush1.msra.mxu0 %v104
    %374 = vmatprep.subr.mxu0 %v107
    %375 = vmatpush1.msra.mxu0 %v106
    %376 = vmatprep.subr.mxu0 %v109
    %377 = vmatpush1.msra.mxu0 %v108
    %378 = vmatprep.subr.mxu0 %v111
    %379 = vmatpush1.msra.mxu0 %v110
    %380 = vmatprep.subr.mxu0 %v113
    %381 = vmatpush1.msra.mxu0 %v112
    %382 = vmatprep.subr.mxu0 %v115
    %383 = vmatpush1.msra.mxu0 %v114
    %384 = vmatprep.subr.mxu0 %v117
    %385 = vmatpush1.msra.mxu0 %v116
    %386 = vmatprep.subr.mxu0 %v119
    %387 = vmatpush1.msra.mxu0 %v118
    %388 = vmatprep.subr.mxu0 %v121
    %389 = vmatpush1.msra.mxu0 %v120
    %390 = vmatprep.subr.mxu0 %v123
    %391 = vmatpush1.msra.mxu0 %v122
    %392 = vmatprep.subr.mxu0 %v125
    %393 = vmatpush1.msra.mxu0 %v124
    %394 = vmatprep.subr.mxu0 %v127
    %395 = vmatpush1.msra.mxu0 %v126
    %396 = vmatprep.subr.mxu0 %v129
    %397 = vmatpush1.msra.mxu0 %v128
    %398 = vmatprep.subr.mxu0 %v131
    %399 = vmatpush1.msra.mxu0 %v130
    %400 = vmatprep.subr.mxu0 %v133
    %401 = vmatpush1.msra.mxu0 %v132
    %402 = vmatprep.subr.mxu0 %v135
    %403 = vmatpush1.msra.mxu0 %v134
    %404 = vmatprep.subr.mxu0 %v137
    %405 = vmatpush1.msra.mxu0 %v136
    %406 = vmatprep.subr.mxu0 %v139
    %407 = vmatpush1.msra.mxu0 %v138
    %408 = vmatprep.subr.mxu0 %v141
    %409 = vmatpush1.msra.mxu0 %v140
    %410 = vmatprep.mubr.f32.mxu0 %v71
    %411 = vmatmul.mubr.f32.gmra.mrb[0].mxu0 %v70
    %v412 = vpop.f32.mrb[0].mxu0
    %v413 = vadd.f32 %v339, %v412
    %v414 = vpop.f32.mrb[0].mxu0
    %v415 = vadd.f32 %v343, %v414
    %416 = vdwg.mxu0
    %417 = vmatprep.subr.mxu0 %v143
    %418 = vmatpush1.msra.mxu0 %v142
    %419 = vmatprep.subr.mxu0 %v145
    %420 = vmatpush1.msra.mxu0 %v144
    %421 = vmatprep.subr.mxu0 %v147
    %422 = vmatpush1.msra.mxu0 %v146
    %423 = vmatprep.subr.mxu0 %v149
    %424 = vmatpush1.msra.mxu0 %v148
    %425 = vmatprep.subr.mxu0 %v151
    %426 = vmatpush1.msra.mxu0 %v150
    %427 = vmatprep.subr.mxu0 %v153
    %428 = vmatpush1.msra.mxu0 %v152
    %429 = vmatprep.subr.mxu0 %v155
    %430 = vmatpush1.msra.mxu0 %v154
    %431 = vmatprep.subr.mxu0 %v157
    %432 = vmatpush1.msra.mxu0 %v156
    %433 = vmatprep.subr.mxu0 %v159
    %434 = vmatpush1.msra.mxu0 %v158
    %435 = vmatprep.subr.mxu0 %v161
    %436 = vmatpush1.msra.mxu0 %v160
    %437 = vmatprep.subr.mxu0 %v163
    %438 = vmatpush1.msra.mxu0 %v162
    %439 = vmatprep.subr.mxu0 %v165
    %440 = vmatpush1.msra.mxu0 %v164
    %441 = vmatprep.subr.mxu0 %v167
    %442 = vmatpush1.msra.mxu0 %v166
    %443 = vmatprep.subr.mxu0 %v169
    %444 = vmatpush1.msra.mxu0 %v168
    %445 = vmatprep.subr.mxu0 %v171
    %446 = vmatpush1.msra.mxu0 %v170
    %447 = vmatprep.subr.mxu0 %v173
    %448 = vmatpush1.msra.mxu0 %v172
    %449 = vmatprep.subr.mxu0 %v175
    %450 = vmatpush1.msra.mxu0 %v174
    %451 = vmatprep.subr.mxu0 %v177
    %452 = vmatpush1.msra.mxu0 %v176
    %453 = vmatprep.subr.mxu0 %v179
    %454 = vmatpush1.msra.mxu0 %v178
    %455 = vmatprep.subr.mxu0 %v181
    %456 = vmatpush1.msra.mxu0 %v180
    %457 = vmatprep.subr.mxu0 %v183
    %458 = vmatpush1.msra.mxu0 %v182
    %459 = vmatprep.subr.mxu0 %v185
    %460 = vmatpush1.msra.mxu0 %v184
    %461 = vmatprep.subr.mxu0 %v187
    %462 = vmatpush1.msra.mxu0 %v186
    %463 = vmatprep.subr.mxu0 %v189
    %464 = vmatpush1.msra.mxu0 %v188
    %465 = vmatprep.subr.mxu0 %v191
    %466 = vmatpush1.msra.mxu0 %v190
    %467 = vmatprep.subr.mxu0 %v193
    %468 = vmatpush1.msra.mxu0 %v192
    %469 = vmatprep.subr.mxu0 %v195
    %470 = vmatpush1.msra.mxu0 %v194
    %471 = vmatprep.subr.mxu0 %v197
    %472 = vmatpush1.msra.mxu0 %v196
    %473 = vmatprep.subr.mxu0 %v199
    %474 = vmatpush1.msra.mxu0 %v198
    %475 = vmatprep.subr.mxu0 %v201
    %476 = vmatpush1.msra.mxu0 %v200
    %477 = vmatprep.subr.mxu0 %v203
    %478 = vmatpush1.msra.mxu0 %v202
    %479 = vmatprep.subr.mxu0 %v205
    %480 = vmatpush1.msra.mxu0 %v204
    %481 = vmatprep.mubr.f32.mxu0 %v73
    %482 = vmatmul.mubr.f32.gmra.mrb[0].mxu0 %v72
    %v483 = vpop.f32.mrb[0].mxu0
    %v484 = vadd.f32 %v413, %v483
    %v485 = vpop.f32.mrb[0].mxu0
    %v486 = vadd.f32 %v415, %v485
    %487 = vdwg.mxu0
    %488 = vmatprep.subr.mxu0 %v207
    %489 = vmatpush1.msra.mxu0 %v206
    %490 = vmatprep.subr.mxu0 %v209
    %491 = vmatpush1.msra.mxu0 %v208
    %492 = vmatprep.subr.mxu0 %v211
    %493 = vmatpush1.msra.mxu0 %v210
    %494 = vmatprep.subr.mxu0 %v213
    %495 = vmatpush1.msra.mxu0 %v212
    %496 = vmatprep.subr.mxu0 %v215
    %497 = vmatpush1.msra.mxu0 %v214
    %498 = vmatprep.subr.mxu0 %v217
    %499 = vmatpush1.msra.mxu0 %v216
    %500 = vmatprep.subr.mxu0 %v219
    %501 = vmatpush1.msra.mxu0 %v218
    %502 = vmatprep.subr.mxu0 %v221
    %503 = vmatpush1.msra.mxu0 %v220
    %504 = vmatprep.subr.mxu0 %v223
    %505 = vmatpush1.msra.mxu0 %v222
    %506 = vmatprep.subr.mxu0 %v225
    %507 = vmatpush1.msra.mxu0 %v224
    %508 = vmatprep.subr.mxu0 %v227
    %509 = vmatpush1.msra.mxu0 %v226
    %510 = vmatprep.subr.mxu0 %v229
    %511 = vmatpush1.msra.mxu0 %v228
    %512 = vmatprep.subr.mxu0 %v231
    %513 = vmatpush1.msra.mxu0 %v230
    %514 = vmatprep.subr.mxu0 %v233
    %515 = vmatpush1.msra.mxu0 %v232
    %516 = vmatprep.subr.mxu0 %v235
    %517 = vmatpush1.msra.mxu0 %v234
    %518 = vmatprep.subr.mxu0 %v237
    %519 = vmatpush1.msra.mxu0 %v236
    %520 = vmatprep.subr.mxu0 %v239
    %521 = vmatpush1.msra.mxu0 %v238
    %522 = vmatprep.subr.mxu0 %v241
    %523 = vmatpush1.msra.mxu0 %v240
    %524 = vmatprep.subr.mxu0 %v243
    %525 = vmatpush1.msra.mxu0 %v242
    %526 = vmatprep.subr.mxu0 %v245
    %527 = vmatpush1.msra.mxu0 %v244
    %528 = vmatprep.subr.mxu0 %v247
    %529 = vmatpush1.msra.mxu0 %v246
    %530 = vmatprep.subr.mxu0 %v249
    %531 = vmatpush1.msra.mxu0 %v248
    %532 = vmatprep.subr.mxu0 %v251
    %533 = vmatpush1.msra.mxu0 %v250
    %534 = vmatprep.subr.mxu0 %v253
    %535 = vmatpush1.msra.mxu0 %v252
    %536 = vmatprep.subr.mxu0 %v255
    %537 = vmatpush1.msra.mxu0 %v254
    %538 = vmatprep.subr.mxu0 %v257
    %539 = vmatpush1.msra.mxu0 %v256
    %540 = vmatprep.subr.mxu0 %v259
    %541 = vmatpush1.msra.mxu0 %v258
    %542 = vmatprep.subr.mxu0 %v261
    %543 = vmatpush1.msra.mxu0 %v260
    %544 = vmatprep.subr.mxu0 %v263
    %545 = vmatpush1.msra.mxu0 %v262
    %546 = vmatprep.subr.mxu0 %v265
    %547 = vmatpush1.msra.mxu0 %v264
    %548 = vmatprep.subr.mxu0 %v267
    %549 = vmatpush1.msra.mxu0 %v266
    %550 = vmatprep.subr.mxu0 %v269
    %551 = vmatpush1.msra.mxu0 %v268
    %552 = vmatprep.mubr.f32.mxu0 %v75
    %553 = vmatmul.mubr.f32.gmra.mrb[0].mxu0 %v74
    %v554 = vpop.f32.mrb[0].mxu0
    %v555 = vadd.f32 %v484, %v554
    %v556 = vpop.f32.mrb[0].mxu0
    %v557 = vadd.f32 %v486, %v556
    %558 = vdwg.mxu0
    %559 = vmatprep.subr.mxu0 %v271
    %560 = vmatpush1.msra.mxu0 %v270
    %561 = vmatprep.subr.mxu0 %v273
    %562 = vmatpush1.msra.mxu0 %v272
    %563 = vmatprep.subr.mxu0 %v275
    %564 = vmatpush1.msra.mxu0 %v274
    %565 = vmatprep.subr.mxu0 %v277
    %566 = vmatpush1.msra.mxu0 %v276
    %567 = vmatprep.subr.mxu0 %v279
    %568 = vmatpush1.msra.mxu0 %v278
    %569 = vmatprep.subr.mxu0 %v281
    %570 = vmatpush1.msra.mxu0 %v280
    %571 = vmatprep.subr.mxu0 %v283
    %572 = vmatpush1.msra.mxu0 %v282
    %573 = vmatprep.subr.mxu0 %v285
    %574 = vmatpush1.msra.mxu0 %v284
    %575 = vmatprep.subr.mxu0 %v287
    %576 = vmatpush1.msra.mxu0 %v286
    %577 = vmatprep.subr.mxu0 %v289
    %578 = vmatpush1.msra.mxu0 %v288
    %579 = vmatprep.subr.mxu0 %v291
    %580 = vmatpush1.msra.mxu0 %v290
    %581 = vmatprep.subr.mxu0 %v293
    %582 = vmatpush1.msra.mxu0 %v292
    %583 = vmatprep.subr.mxu0 %v295
    %584 = vmatpush1.msra.mxu0 %v294
    %585 = vmatprep.subr.mxu0 %v297
    %586 = vmatpush1.msra.mxu0 %v296
    %587 = vmatprep.subr.mxu0 %v299
    %588 = vmatpush1.msra.mxu0 %v298
    %589 = vmatprep.subr.mxu0 %v301
    %590 = vmatpush1.msra.mxu0 %v300
    %591 = vmatprep.subr.mxu0 %v303
    %592 = vmatpush1.msra.mxu0 %v302
    %593 = vmatprep.subr.mxu0 %v305
    %594 = vmatpush1.msra.mxu0 %v304
    %595 = vmatprep.subr.mxu0 %v307
    %596 = vmatpush1.msra.mxu0 %v306
    %597 = vmatprep.subr.mxu0 %v309
    %598 = vmatpush1.msra.mxu0 %v308
    %599 = vmatprep.subr.mxu0 %v311
    %600 = vmatpush1.msra.mxu0 %v310
    %601 = vmatprep.subr.mxu0 %v313
    %602 = vmatpush1.msra.mxu0 %v312
    %603 = vmatprep.subr.mxu0 %v315
    %604 = vmatpush1.msra.mxu0 %v314
    %605 = vmatprep.subr.mxu0 %v317
    %606 = vmatpush1.msra.mxu0 %v316
    %607 = vmatprep.subr.mxu0 %v319
    %608 = vmatpush1.msra.mxu0 %v318
    %609 = vmatprep.subr.mxu0 %v321
    %610 = vmatpush1.msra.mxu0 %v320
    %611 = vmatprep.subr.mxu0 %v323
    %612 = vmatpush1.msra.mxu0 %v322
    %613 = vmatprep.subr.mxu0 %v325
    %614 = vmatpush1.msra.mxu0 %v324
    %615 = vmatprep.subr.mxu0 %v327
    %616 = vmatpush1.msra.mxu0 %v326
    %617 = vmatprep.subr.mxu0 %v329
    %618 = vmatpush1.msra.mxu0 %v328
    %619 = vmatprep.subr.mxu0 %v331
    %620 = vmatpush1.msra.mxu0 %v330
    %621 = vmatprep.subr.mxu0 %v333
    %622 = vmatpush1.msra.mxu0 %v332
    %623 = vmatprep.mubr.f32.mxu0 %v77
    %624 = vmatmul.mubr.f32.gmra.mrb[0].mxu0 %v76
    %v625 = vpop.f32.mrb[0].mxu0
    %v626 = vadd.f32 %v555, %v625
    %v627 = vpop.f32.mrb[0].mxu0
    %v628 = vadd.f32 %v557, %v627
    %629 = vdwg.mxu0
    %v630 = vmax.f32 %v626, 0.0
    %v631 = vmax.f32 %v628, 0.0
    %v632 = vrot.slane %v630, 4
    %v633 = vadd.f32 %v630, %v632
    %v634 = vrot.slane %v633, 2
    %v635 = vadd.f32 %v633, %v634
    %v636 = vrot.slane %v635, 1
    %v637 = vadd.f32 %v635, %v636
    %v638 = vrot.slane %v631, 4
    %v639 = vadd.f32 %v631, %v638
    %v640 = vrot.slane %v639, 2
    %v641 = vadd.f32 %v639, %v640
    %v642 = vrot.slane %v641, 1
    %v643 = vadd.f32 %v641, %v642
    %v644 = vrcp.pop 8.0
    %v645 = vmul.f32 %v637, %v644
    %v646 = vmul.f32 %v643, %v644
    %v647 = vmul.f32 %v630, %v630
    %v648 = vmul.f32 %v631, %v631
    %v649 = vrot.slane %v647, 4
    %v650 = vadd.f32 %v647, %v649
    %v651 = vrot.slane %v650, 2
    %v652 = vadd.f32 %v650, %v651
    %v653 = vrot.slane %v652, 1
    %v654 = vadd.f32 %v652, %v653
    %v655 = vrot.slane %v648, 4
    %v656 = vadd.f32 %v648, %v655
    %v657 = vrot.slane %v656, 2
    %v658 = vadd.f32 %v656, %v657
    %v659 = vrot.slane %v658, 1
    %v660 = vadd.f32 %v658, %v659
    %v661 = vmul.f32 %v654, %v644
    %v662 = vmul.f32 %v660, %v644
    %v663 = vmul.f32 %v645, %v645
    %v664 = vmul.f32 %v646, %v646
    %v665 = vsub.f32 %v661, %v663
    %v666 = vsub.f32 %v662, %v664
    %v667 = vadd.f32 %v665, 1e-05
    %v668 = vadd.f32 %v666, 1e-05
    %v669 = vrsqrt.pop %v667
    %v670 = vrsqrt.pop %v668
    %v671 = vld [vmem:[%s3] sm:$0x3]
    %v674 = vcombine.low %v669, %v670
    %v676 = vunpack.c.l.s4 1966171168
    %v677 = vunpack.c.0.s8 %v676
    %v678 = vlaneseq
    %v679 = vshrl.u32 %v678, 7
    %v680 = vsub.s32 %v677, %v679
    %v681 = vrot.slane %v674, %v680
    %v683 = vunpack.c.l.s4 1966171168
    %v684 = vunpack.c.0.s8 %v683
    %v685 = vlaneseq
    %v686 = vshrl.u32 %v685, 7
    %v687 = vsub.s32 %v684, %v686
    %v688 = vrot.slane %v681, %v687
    %v690 = vmul.f32 %v671, %v688
    %v691 = vld [vmem:[%s4] sm:$0x3]
    %v693 = vlaneseq
    %v694 = vshrl.u32 %v693, 7
    %v695 = vsub.s32 0, %v694
    %v696 = vrot.slane %v690, %v695
    %v697 = vlaneseq
    %v698 = vshrl.u32 %v697, 7
    %v699 = vsub.s32 1, %v698
    %v700 = vrot.slane %v690, %v699
    %v703 = vmul.f32 %v645, %v696
    %v704 = vmul.f32 %v646, %v700
    %v707 = vcombine.low %v703, %v704
    %v709 = vunpack.c.l.s4 1966171168
    %v710 = vunpack.c.0.s8 %v709
    %v711 = vlaneseq
    %v712 = vshrl.u32 %v711, 7
    %v713 = vsub.s32 %v710, %v712
    %v714 = vrot.slane %v707, %v713
    %v716 = vunpack.c.l.s4 1966171168
    %v717 = vunpack.c.0.s8 %v716
    %v718 = vlaneseq
    %v719 = vshrl.u32 %v718, 7
    %v720 = vsub.s32 %v717, %v719
    %v721 = vrot.slane %v714, %v720
    %v723 = vsub.f32 %v691, %v721
    %v724 = vmul.f32 %v630, %v696
    %v725 = vmul.f32 %v631, %v700
    %v727 = vlaneseq
    %v728 = vshrl.u32 %v727, 7
    %v729 = vsub.s32 0, %v728
    %v730 = vrot.slane %v723, %v729
    %v731 = vlaneseq
    %v732 = vshrl.u32 %v731, 7
    %v733 = vsub.s32 1, %v732
    %v734 = vrot.slane %v723, %v733
    %v737 = vadd.f32 %v724, %v730
    %v738 = vadd.f32 %v725, %v734
    %v739 = vld [vmem:[%s5] sm:$0xff]
    %v740 = vld [vmem:[%s5 + $0x8] sm:$0xff]
    %v741 = vld [vmem:[%s5 + $0x10] sm:$0xff]
    %v742 = vld [vmem:[%s5 + $0x18] sm:$0xff]
    %v743 = vld [vmem:[%s5 + $0x20] sm:$0xff]
    %v744 = vld [vmem:[%s5 + $0x28] sm:$0xff]
    %v745 = vld [vmem:[%s5 + $0x30] sm:$0xff]
    %v746 = vld [vmem:[%s5 + $0x38] sm:$0xff]
    %v747 = vld [vmem:[%s5 + $0x40] sm:$0xff]
    %v748 = vld [vmem:[%s5 + $0x48] sm:$0xff]
    %v749 = vld [vmem:[%s5 + $0x50] sm:$0xff]
    %v750 = vld [vmem:[%s5 + $0x58] sm:$0xff]
    %v751 = vld [vmem:[%s5 + $0x60] sm:$0xff]
    %v752 = vld [vmem:[%s5 + $0x68] sm:$0xff]
    %v753 = vld [vmem:[%s5 + $0x70] sm:$0xff]
    %v754 = vld [vmem:[%s5 + $0x78] sm:$0xff]
    %v755 = vld [vmem:[%s5 + $0x80] sm:$0xff]
    %v756 = vld [vmem:[%s5 + $0x88] sm:$0xff]
    %v757 = vld [vmem:[%s5 + $0x90] sm:$0xff]
    %v758 = vld [vmem:[%s5 + $0x98] sm:$0xff]
    %v759 = vld [vmem:[%s5 + $0xa0] sm:$0xff]
    %v760 = vld [vmem:[%s5 + $0xa8] sm:$0xff]
    %v761 = vld [vmem:[%s5 + $0xb0] sm:$0xff]
    %v762 = vld [vmem:[%s5 + $0xb8] sm:$0xff]
    %v763 = vld [vmem:[%s5 + $0xc0] sm:$0xff]
    %v764 = vld [vmem:[%s5 + $0xc8] sm:$0xff]
    %v765 = vld [vmem:[%s5 + $0xd0] sm:$0xff]
    %v766 = vld [vmem:[%s5 + $0xd8] sm:$0xff]
    %v767 = vld [vmem:[%s5 + $0xe0] sm:$0xff]
    %v768 = vld [vmem:[%s5 + $0xe8] sm:$0xff]
    %v769 = vld [vmem:[%s5 + $0xf0] sm:$0xff]
    %v770 = vld [vmem:[%s5 + $0xf8] sm:$0xff]
    %v771 = vld [vmem:[%s6] sm:$0x1]
    %v773 = vlaneseq
    %v774 = vshrl.u32 %v773, 7
    %v775 = vsub.s32 0, %v774
    %v776 = vrot.slane %v771, %v775
    %778 = vmatprep.subr.mxu0 0.0
    %779 = vmatpush1.msra.mxu0 %v739
    %780 = vmatprep.subr.mxu0 0.0
    %781 = vmatpush1.msra.mxu0 %v740
    %782 = vmatprep.subr.mxu0 0.0
    %783 = vmatpush1.msra.mxu0 %v741
    %784 = vmatprep.subr.mxu0 0.0
    %785 = vmatpush1.msra.mxu0 %v742
    %786 = vmatprep.subr.mxu0 0.0
    %787 = vmatpush1.msra.mxu0 %v743
    %788 = vmatprep.subr.mxu0 0.0
    %789 = vmatpush1.msra.mxu0 %v744
    %790 = vmatprep.subr.mxu0 0.0
    %791 = vmatpush1.msra.mxu0 %v745
    %792 = vmatprep.subr.mxu0 0.0
    %793 = vmatpush1.msra.mxu0 %v746
    %794 = vmatprep.subr.mxu0 0.0
    %795 = vmatpush1.msra.mxu0 %v747
    %796 = vmatprep.subr.mxu0 0.0
    %797 = vmatpush1.msra.mxu0 %v748
    %798 = vmatprep.subr.mxu0 0.0
    %799 = vmatpush1.msra.mxu0 %v749
    %800 = vmatprep.subr.mxu0 0.0
    %801 = vmatpush1.msra.mxu0 %v750
    %802 = vmatprep.subr.mxu0 0.0
    %803 = vmatpush1.msra.mxu0 %v751
    %804 = vmatprep.subr.mxu0 0.0
    %805 = vmatpush1.msra.mxu0 %v752
    %806 = vmatprep.subr.mxu0 0.0
    %807 = vmatpush1.msra.mxu0 %v753
    %808 = vmatprep.subr.mxu0 0.0
    %809 = vmatpush1.msra.mxu0 %v754
    %810 = vmatprep.subr.mxu0 0.0
    %811 = vmatpush1.msra.mxu0 %v755
    %812 = vmatprep.subr.mxu0 0.0
    %813 = vmatpush1.msra.mxu0 %v756
    %814 = vmatprep.subr.mxu0 0.0
    %815 = vmatpush1.msra.mxu0 %v757
    %816 = vmatprep.subr.mxu0 0.0
    %817 = vmatpush1.msra.mxu0 %v758
    %818 = vmatprep.subr.mxu0 0.0
    %819 = vmatpush1.msra.mxu0 %v759
    %820 = vmatprep.subr.mxu0 0.0
    %821 = vmatpush1.msra.mxu0 %v760
    %822 = vmatprep.subr.mxu0 0.0
    %823 = vmatpush1.msra.mxu0 %v761
    %824 = vmatprep.subr.mxu0 0.0
    %825 = vmatpush1.msra.mxu0 %v762
    %826 = vmatprep.subr.mxu0 0.0
    %827 = vmatpush1.msra.mxu0 %v763
    %828 = vmatprep.subr.mxu0 0.0
    %829 = vmatpush1.msra.mxu0 %v764
    %830 = vmatprep.subr.mxu0 0.0
    %831 = vmatpush1.msra.mxu0 %v765
    %832 = vmatprep.subr.mxu0 0.0
    %833 = vmatpush1.msra.mxu0 %v766
    %834 = vmatprep.subr.mxu0 0.0
    %835 = vmatpush1.msra.mxu0 %v767
    %836 = vmatprep.subr.mxu0 0.0
    %837 = vmatpush1.msra.mxu0 %v768
    %838 = vmatprep.subr.mxu0 0.0
    %839 = vmatpush1.msra.mxu0 %v769
    %840 = vmatprep.subr.mxu0 0.0
    %841 = vmatpush1.msra.mxu0 %v770
    %842 = vmatprep.mubr.f32.mxu0 %v738
    %843 = vmatmul.mubr.f32.gmra.mrb[0].mxu0 %v737
    %v844 = vpop.f32.mrb[0].mxu0
    %v845 = vadd.f32 %v776, %v844
    %v846 = vpop.f32.mrb[0].mxu0
    %847 = vdwg.mxu0
    %v848 = vmax.f32 %v845, 0.0
    %v849 = vrot.slane %v848, 4
    %v850 = vadd.f32 %v848, %v849
    %v851 = vrot.slane %v850, 2
    %v852 = vadd.f32 %v850, %v851
    %v853 = vrot.slane %v852, 1
    %v854 = vadd.f32 %v852, %v853
    %v855 = vmul.f32 %v854, %v644
    %v856 = vmul.f32 %v848, %v848
    %v857 = vrot.slane %v856, 4
    %v858 = vadd.f32 %v856, %v857
    %v859 = vrot.slane %v858, 2
    %v860 = vadd.f32 %v858, %v859
    %v861 = vrot.slane %v860, 1
    %v862 = vadd.f32 %v860, %v861
    %v863 = vmul.f32 %v862, %v644
    %v864 = vmul.f32 %v855, %v855
    %v865 = vsub.f32 %v863, %v864
    %v866 = vadd.f32 %v865, 1e-05
    %v867 = vrsqrt.pop %v866
    %v868 = vld [vmem:[%s7] sm:$0x1]
    %v869 = vmul.f32 %v868, %v867
    %v870 = vld [vmem:[%s8] sm:$0x1]
    %v871 = vmul.f32 %v855, %v869
    %v872 = vsub.f32 %v870, %v871
    %v874 = vlaneseq
    %v875 = vshrl.u32 %v874, 7
    %v876 = vsub.s32 0, %v875
    %v877 = vrot.slane %v869, %v876
    %v879 = vmul.f32 %v848, %v877
    %v881 = vlaneseq
    %v882 = vshrl.u32 %v881, 7
    %v883 = vsub.s32 0, %v882
    %v884 = vrot.slane %v872, %v883
    %v886 = vadd.f32 %v879, %v884
    %v887 = vld [vmem:[%s9] sm:$0xff]
    %v888 = vld [vmem:[%s9 + $0x8] sm:$0xff]
    %v889 = vld [vmem:[%s9 + $0x10] sm:$0xff]
    %v890 = vld [vmem:[%s9 + $0x18] sm:$0xff]
    %v891 = vld [vmem:[%s9 + $0x20] sm:$0xff]
    %v892 = vld [vmem:[%s9 + $0x28] sm:$0xff]
    %v893 = vld [vmem:[%s9 + $0x30] sm:$0xff]
    %v894 = vld [vmem:[%s9 + $0x38] sm:$0xff]
    %v895 = vld [vmem:[%s9 + $0x40] sm:$0xff]
    %v896 = vld [vmem:[%s9 + $0x48] sm:$0xff]
    %v897 = vld [vmem:[%s9 + $0x50] sm:$0xff]
    %v898 = vld [vmem:[%s9 + $0x58] sm:$0xff]
    %v899 = vld [vmem:[%s9 + $0x60] sm:$0xff]
    %v900 = vld [vmem:[%s9 + $0x68] sm:$0xff]
    %v901 = vld [vmem:[%s9 + $0x70] sm:$0xff]
    %v902 = vld [vmem:[%s9 + $0x78] sm:$0xff]
    %v903 = vld [vmem:[#allocation5] sm:$0xff]
    %v904 = vld [vmem:[#allocation5 + $0x8] sm:$0xff]
    %v905 = vld [vmem:[#allocation5 + $0x10] sm:$0xff]
    %v906 = vld [vmem:[#allocation5 + $0x18] sm:$0xff]
    %v907 = vld [vmem:[#allocation5 + $0x20] sm:$0xff]
    %v908 = vld [vmem:[#allocation5 + $0x28] sm:$0xff]
    %v909 = vld [vmem:[#allocation5 + $0x30] sm:$0xff]
    %v910 = vld [vmem:[#allocation5 + $0x38] sm:$0xff]
    %v911 = vld [vmem:[#allocation5 + $0x40] sm:$0xff]
    %v912 = vld [vmem:[#allocation5 + $0x48] sm:$0xff]
    %v913 = vld [vmem:[#allocation5 + $0x50] sm:$0xff]
    %v914 = vld [vmem:[#allocation5 + $0x58] sm:$0xff]
    %v915 = vld [vmem:[#allocation5 + $0x60] sm:$0xff]
    %v916 = vld [vmem:[#allocation5 + $0x68] sm:$0xff]
    %v917 = vld [vmem:[#allocation5 + $0x70] sm:$0xff]
    %v918 = vld [vmem:[#allocation5 + $0x78] sm:$0xff]
    %v919 = vld [vmem:[#allocation5 + $0x80] sm:$0xff]
    %v920 = vld [vmem:[#allocation5 + $0x88] sm:$0xff]
    %v921 = vld [vmem:[#allocation5 + $0x90] sm:$0xff]
    %v922 = vld [vmem:[#allocation5 + $0x98] sm:$0xff]
    %v923 = vld [vmem:[#allocation5 + $0xa0] sm:$0xff]
    %v924 = vld [vmem:[#allocation5 + $0xa8] sm:$0xff]
    %v925 = vld [vmem:[#allocation5 + $0xb0] sm:$0xff]
    %v926 = vld [vmem:[#allocation5 + $0xb8] sm:$0xff]
    %v927 = vld [vmem:[#allocation5 + $0xc0] sm:$0xff]
    %v928 = vld [vmem:[#allocation5 + $0xc8] sm:$0xff]
    %v929 = vld [vmem:[#allocation5 + $0xd0] sm:$0xff]
    %v930 = vld [vmem:[#allocation5 + $0xd8] sm:$0xff]
    %v931 = vld [vmem:[#allocation5 + $0xe0] sm:$0xff]
    %v932 = vld [vmem:[#allocation5 + $0xe8] sm:$0xff]
    %v933 = vld [vmem:[#allocation5 + $0xf0] sm:$0xff]
    %v934 = vld [vmem:[#allocation5 + $0xf8] sm:$0xff]
    %v935 = vld [vmem:[#allocation5 + $0x100] sm:$0xff]
    %v936 = vld [vmem:[#allocation5 + $0x108] sm:$0xff]
    %v937 = vld [vmem:[#allocation5 + $0x110] sm:$0xff]
    %v938 = vld [vmem:[#allocation5 + $0x118] sm:$0xff]
    %v939 = vld [vmem:[#allocation5 + $0x120] sm:$0xff]
    %v940 = vld [vmem:[#allocation5 + $0x128] sm:$0xff]
    %v941 = vld [vmem:[#allocation5 + $0x130] sm:$0xff]
    %v942 = vld [vmem:[#allocation5 + $0x138] sm:$0xff]
    %v943 = vld [vmem:[#allocation5 + $0x140] sm:$0xff]
    %v944 = vld [vmem:[#allocation5 + $0x148] sm:$0xff]
    %v945 = vld [vmem:[#allocation5 + $0x150] sm:$0xff]
    %v946 = vld [vmem:[#allocation5 + $0x158] sm:$0xff]
    %v947 = vld [vmem:[#allocation5 + $0x160] sm:$0xff]
    %v948 = vld [vmem:[#allocation5 + $0x168] sm:$0xff]
    %v949 = vld [vmem:[#allocation5 + $0x170] sm:$0xff]
    %v950 = vld [vmem:[#allocation5 + $0x178] sm:$0xff]
    %v951 = vld [vmem:[#allocation5 + $0x180] sm:$0xff]
    %v952 = vld [vmem:[#allocation5 + $0x188] sm:$0xff]
    %v953 = vld [vmem:[#allocation5 + $0x190] sm:$0xff]
    %v954 = vld [vmem:[#allocation5 + $0x198] sm:$0xff]
    %v955 = vld [vmem:[#allocation5 + $0x1a0] sm:$0xff]
    %v956 = vld [vmem:[#allocation5 + $0x1a8] sm:$0xff]
    %v957 = vld [vmem:[#allocation5 + $0x1b0] sm:$0xff]
    %v958 = vld [vmem:[#allocation5 + $0x1b8] sm:$0xff]
    %v959 = vld [vmem:[#allocation5 + $0x1c0] sm:$0xff]
    %v960 = vld [vmem:[#allocation5 + $0x1c8] sm:$0xff]
    %v961 = vld [vmem:[#allocation5 + $0x1d0] sm:$0xff]
    %v962 = vld [vmem:[#allocation5 + $0x1d8] sm:$0xff]
    %v963 = vld [vmem:[#allocation5 + $0x1e0] sm:$0xff]
    %v964 = vld [vmem:[#allocation5 + $0x1e8] sm:$0xff]
    %v965 = vld [vmem:[#allocation5 + $0x1f0] sm:$0xff]
    %v966 = vld [vmem:[#allocation5 + $0x1f8] sm:$0xff]
    %v967 = vld [vmem:[#allocation5 + $0x200] sm:$0xff]
    %v968 = vld [vmem:[#allocation5 + $0x208] sm:$0xff]
    %v969 = vld [vmem:[#allocation5 + $0x210] sm:$0xff]
    %v970 = vld [vmem:[#allocation5 + $0x218] sm:$0xff]
    %v971 = vld [vmem:[#allocation5 + $0x220] sm:$0xff]
    %v972 = vld [vmem:[#allocation5 + $0x228] sm:$0xff]
    %v973 = vld [vmem:[#allocation5 + $0x230] sm:$0xff]
    %v974 = vld [vmem:[#allocation5 + $0x238] sm:$0xff]
    %v975 = vld [vmem:[#allocation5 + $0x240] sm:$0xff]
    %v976 = vld [vmem:[#allocation5 + $0x248] sm:$0xff]
    %v977 = vld [vmem:[#allocation5 + $0x250] sm:$0xff]
    %v978 = vld [vmem:[#allocation5 + $0x258] sm:$0xff]
    %v979 = vld [vmem:[#allocation5 + $0x260] sm:$0xff]
    %v980 = vld [vmem:[#allocation5 + $0x268] sm:$0xff]
    %v981 = vld [vmem:[#allocation5 + $0x270] sm:$0xff]
    %v982 = vld [vmem:[#allocation5 + $0x278] sm:$0xff]
    %v983 = vld [vmem:[#allocation5 + $0x280] sm:$0xff]
    %v984 = vld [vmem:[#allocation5 + $0x288] sm:$0xff]
    %v985 = vld [vmem:[#allocation5 + $0x290] sm:$0xff]
    %v986 = vld [vmem:[#allocation5 + $0x298] sm:$0xff]
    %v987 = vld [vmem:[#allocation5 + $0x2a0] sm:$0xff]
    %v988 = vld [vmem:[#allocation5 + $0x2a8] sm:$0xff]
    %v989 = vld [vmem:[#allocation5 + $0x2b0] sm:$0xff]
    %v990 = vld [vmem:[#allocation5 + $0x2b8] sm:$0xff]
    %v991 = vld [vmem:[#allocation5 + $0x2c0] sm:$0xff]
    %v992 = vld [vmem:[#allocation5 + $0x2c8] sm:$0xff]
    %v993 = vld [vmem:[#allocation5 + $0x2d0] sm:$0xff]
    %v994 = vld [vmem:[#allocation5 + $0x2d8] sm:$0xff]
    %v995 = vld [vmem:[#allocation5 + $0x2e0] sm:$0xff]
    %v996 = vld [vmem:[#allocation5 + $0x2e8] sm:$0xff]
    %v997 = vld [vmem:[#allocation5 + $0x2f0] sm:$0xff]
    %v998 = vld [vmem:[#allocation5 + $0x2f8] sm:$0xff]
    %v999 = vld [vmem:[#allocation5 + $0x300] sm:$0xff]
    %v1000 = vld [vmem:[#allocation5 + $0x308] sm:$0xff]
    %v1001 = vld [vmem:[#allocation5 + $0x310] sm:$0xff]
    %v1002 = vld [vmem:[#allocation5 + $0x318] sm:$0xff]
    %v1003 = vld [vmem:[#allocation5 + $0x320] sm:$0xff]
    %v1004 = vld [vmem:[#allocation5 + $0x328] sm:$0xff]
    %v1005 = vld [vmem:[#allocation5 + $0x330] sm:$0xff]
    %v1006 = vld [vmem:[#allocation5 + $0x338] sm:$0xff]
    %v1007 = vld [vmem:[#allocation5 + $0x340] sm:$0xff]
    %v1008 = vld [vmem:[#allocation5 + $0x348] sm:$0xff]
    %v1009 = vld [vmem:[#allocation5 + $0x350] sm:$0xff]
    %v1010 = vld [vmem:[#allocation5 + $0x358] sm:$0xff]
    %v1011 = vld [vmem:[#allocation5 + $0x360] sm:$0xff]
    %v1012 = vld [vmem:[#allocation5 + $0x368] sm:$0xff]
    %v1013 = vld [vmem:[#allocation5 + $0x370] sm:$0xff]
    %v1014 = vld [vmem:[#allocation5 + $0x378] sm:$0xff]
    %v1015 = vld [vmem:[#allocation5 + $0x380] sm:$0xff]
    %v1016 = vld [vmem:[#allocation5 + $0x388] sm:$0xff]
    %v1017 = vld [vmem:[#allocation5 + $0x390] sm:$0xff]
    %v1018 = vld [vmem:[#allocation5 + $0x398] sm:$0xff]
    %v1019 = vld [vmem:[#allocation5 + $0x3a0] sm:$0xff]
    %v1020 = vld [vmem:[#allocation5 + $0x3a8] sm:$0xff]
    %v1021 = vld [vmem:[#allocation5 + $0x3b0] sm:$0xff]
    %v1022 = vld [vmem:[#allocation5 + $0x3b8] sm:$0xff]
    %v1023 = vld [vmem:[#allocation5 + $0x3c0] sm:$0xff]
    %v1024 = vld [vmem:[#allocation5 + $0x3c8] sm:$0xff]
    %v1025 = vld [vmem:[#allocation5 + $0x3d0] sm:$0xff]
    %v1026 = vld [vmem:[#allocation5 + $0x3d8] sm:$0xff]
    %v1027 = vld [vmem:[#allocation5 + $0x3e0] sm:$0xff]
    %v1028 = vld [vmem:[#allocation5 + $0x3e8] sm:$0xff]
    %v1029 = vld [vmem:[#allocation5 + $0x3f0] sm:$0xff]
    %v1030 = vld [vmem:[#allocation5 + $0x3f8] sm:$0xff]
    %1031 = vmatprep.subr.mxu0 0.0
    %1032 = vmatpush1.msra.mxu0 %v903
    %1033 = vmatprep.subr.mxu0 0.0
    %1034 = vmatpush1.msra.mxu0 %v904
    %1035 = vmatprep.subr.mxu0 0.0
    %1036 = vmatpush1.msra.mxu0 %v905
    %1037 = vmatprep.subr.mxu0 0.0
    %1038 = vmatpush1.msra.mxu0 %v906
    %1039 = vmatprep.subr.mxu0 0.0
    %1040 = vmatpush1.msra.mxu0 %v907
    %1041 = vmatprep.subr.mxu0 0.0
    %1042 = vmatpush1.msra.mxu0 %v908
    %1043 = vmatprep.subr.mxu0 0.0
    %1044 = vmatpush1.msra.mxu0 %v909
    %1045 = vmatprep.subr.mxu0 0.0
    %1046 = vmatpush1.msra.mxu0 %v910
    %1047 = vmatprep.subr.mxu0 0.0
    %1048 = vmatpush1.msra.mxu0 %v911
    %1049 = vmatprep.subr.mxu0 0.0
    %1050 = vmatpush1.msra.mxu0 %v912
    %1051 = vmatprep.subr.mxu0 0.0
    %1052 = vmatpush1.msra.mxu0 %v913
    %1053 = vmatprep.subr.mxu0 0.0
    %1054 = vmatpush1.msra.mxu0 %v914
    %1055 = vmatprep.subr.mxu0 0.0
    %1056 = vmatpush1.msra.mxu0 %v915
    %1057 = vmatprep.subr.mxu0 0.0
    %1058 = vmatpush1.msra.mxu0 %v916
    %1059 = vmatprep.subr.mxu0 0.0
    %1060 = vmatpush1.msra.mxu0 %v917
    %1061 = vmatprep.subr.mxu0 0.0
    %1062 = vmatpush1.msra.mxu0 %v918
    %1063 = vmatprep.subr.mxu0 0.0
    %1064 = vmatpush1.msra.mxu0 %v919
    %1065 = vmatprep.subr.mxu0 0.0
    %1066 = vmatpush1.msra.mxu0 %v920
    %1067 = vmatprep.subr.mxu0 0.0
    %1068 = vmatpush1.msra.mxu0 %v921
    %1069 = vmatprep.subr.mxu0 0.0
    %1070 = vmatpush1.msra.mxu0 %v922
    %1071 = vmatprep.subr.mxu0 0.0
    %1072 = vmatpush1.msra.mxu0 %v923
    %1073 = vmatprep.subr.mxu0 0.0
    %1074 = vmatpush1.msra.mxu0 %v924
    %1075 = vmatprep.subr.mxu0 0.0
    %1076 = vmatpush1.msra.mxu0 %v925
    %1077 = vmatprep.subr.mxu0 0.0
    %1078 = vmatpush1.msra.mxu0 %v926
    %1079 = vmatprep.subr.mxu0 0.0
    %1080 = vmatpush1.msra.mxu0 %v927
    %1081 = vmatprep.subr.mxu0 0.0
    %1082 = vmatpush1.msra.mxu0 %v928
    %1083 = vmatprep.subr.mxu0 0.0
    %1084 = vmatpush1.msra.mxu0 %v929
    %1085 = vmatprep.subr.mxu0 0.0
    %1086 = vmatpush1.msra.mxu0 %v930
    %1087 = vmatprep.subr.mxu0 0.0
    %1088 = vmatpush1.msra.mxu0 %v931
    %1089 = vmatprep.subr.mxu0 0.0
    %1090 = vmatpush1.msra.mxu0 %v932
    %1091 = vmatprep.subr.mxu0 0.0
    %1092 = vmatpush1.msra.mxu0 %v933
    %1093 = vmatprep.subr.mxu0 0.0
    %1094 = vmatpush1.msra.mxu0 %v934
    %1095 = vmatprep.mubr.f32.mxu0 %v71
    %1096 = vmatmul.mubr.f32.gmra.mrb[0].mxu0 %v70
    %v1097 = vpop.f32.mrb[0].mxu0
    %v1098 = vadd.f32 0.0, %v1097
    %v1099 = vpop.f32.mrb[0].mxu0
    %1100 = vdwg.mxu0
    %1101 = vmatprep.subr.mxu0 0.0
    %1102 = vmatpush1.msra.mxu0 %v935
    %1103 = vmatprep.subr.mxu0 0.0
    %1104 = vmatpush1.msra.mxu0 %v936
    %1105 = vmatprep.subr.mxu0 0.0
    %1106 = vmatpush1.msra.mxu0 %v937
    %1107 = vmatprep.subr.mxu0 0.0
    %1108 = vmatpush1.msra.mxu0 %v938
    %1109 = vmatprep.subr.mxu0 0.0
    %1110 = vmatpush1.msra.mxu0 %v939
    %1111 = vmatprep.subr.mxu0 0.0
    %1112 = vmatpush1.msra.mxu0 %v940
    %1113 = vmatprep.subr.mxu0 0.0
    %1114 = vmatpush1.msra.mxu0 %v941
    %1115 = vmatprep.subr.mxu0 0.0
    %1116 = vmatpush1.msra.mxu0 %v942
    %1117 = vmatprep.subr.mxu0 0.0
    %1118 = vmatpush1.msra.mxu0 %v943
    %1119 = vmatprep.subr.mxu0 0.0
    %1120 = vmatpush1.msra.mxu0 %v944
    %1121 = vmatprep.subr.mxu0 0.0
    %1122 = vmatpush1.msra.mxu0 %v945
    %1123 = vmatprep.subr.mxu0 0.0
    %1124 = vmatpush1.msra.mxu0 %v946
    %1125 = vmatprep.subr.mxu0 0.0
    %1126 = vmatpush1.msra.mxu0 %v947
    %1127 = vmatprep.subr.mxu0 0.0
    %1128 = vmatpush1.msra.mxu0 %v948
    %1129 = vmatprep.subr.mxu0 0.0
    %1130 = vmatpush1.msra.mxu0 %v949
    %1131 = vmatprep.subr.mxu0 0.0
    %1132 = vmatpush1.msra.mxu0 %v950
    %1133 = vmatprep.subr.mxu0 0.0
    %1134 = vmatpush1.msra.mxu0 %v951
    %1135 = vmatprep.subr.mxu0 0.0
    %1136 = vmatpush1.msra.mxu0 %v952
    %1137 = vmatprep.subr.mxu0 0.0
    %1138 = vmatpush1.msra.mxu0 %v953
    %1139 = vmatprep.subr.mxu0 0.0
    %1140 = vmatpush1.msra.mxu0 %v954
    %1141 = vmatprep.subr.mxu0 0.0
    %1142 = vmatpush1.msra.mxu0 %v955
    %1143 = vmatprep.subr.mxu0 0.0
    %1144 = vmatpush1.msra.mxu0 %v956
    %1145 = vmatprep.subr.mxu0 0.0
    %1146 = vmatpush1.msra.mxu0 %v957
    %1147 = vmatprep.subr.mxu0 0.0
    %1148 = vmatpush1.msra.mxu0 %v958
    %1149 = vmatprep.subr.mxu0 0.0
    %1150 = vmatpush1.msra.mxu0 %v959
    %1151 = vmatprep.subr.mxu0 0.0
    %1152 = vmatpush1.msra.mxu0 %v960
    %1153 = vmatprep.subr.mxu0 0.0
    %1154 = vmatpush1.msra.mxu0 %v961
    %1155 = vmatprep.subr.mxu0 0.0
    %1156 = vmatpush1.msra.mxu0 %v962
    %1157 = vmatprep.subr.mxu0 0.0
    %1158 = vmatpush1.msra.mxu0 %v963
    %1159 = vmatprep.subr.mxu0 0.0
    %1160 = vmatpush1.msra.mxu0 %v964
    %1161 = vmatprep.subr.mxu0 0.0
    %1162 = vmatpush1.msra.mxu0 %v965
    %1163 = vmatprep.subr.mxu0 0.0
    %1164 = vmatpush1.msra.mxu0 %v966
    %1165 = vmatprep.mubr.f32.mxu0 %v73
    %1166 = vmatmul.mubr.f32.gmra.mrb[0].mxu0 %v72
    %v1167 = vpop.f32.mrb[0].mxu0
    %v1168 = vadd.f32 %v1098, %v1167
    %v1169 = vpop.f32.mrb[0].mxu0
    %1170 = vdwg.mxu0
    %1171 = vmatprep.subr.mxu0 0.0
    %1172 = vmatpush1.msra.mxu0 %v967
    %1173 = vmatprep.subr.mxu0 0.0
    %1174 = vmatpush1.msra.mxu0 %v968
    %1175 = vmatprep.subr.mxu0 0.0
    %1176 = vmatpush1.msra.mxu0 %v969
    %1177 = vmatprep.subr.mxu0 0.0
    %1178 = vmatpush1.msra.mxu0 %v970
    %1179 = vmatprep.subr.mxu0 0.0
    %1180 = vmatpush1.msra.mxu0 %v971
    %1181 = vmatprep.subr.mxu0 0.0
    %1182 = vmatpush1.msra.mxu0 %v972
    %1183 = vmatprep.subr.mxu0 0.0
    %1184 = vmatpush1.msra.mxu0 %v973
    %1185 = vmatprep.subr.mxu0 0.0
    %1186 = vmatpush1.msra.mxu0 %v974
    %1187 = vmatprep.subr.mxu0 0.0
    %1188 = vmatpush1.msra.mxu0 %v975
    %1189 = vmatprep.subr.mxu0 0.0
    %1190 = vmatpush1.msra.mxu0 %v976
    %1191 = vmatprep.subr.mxu0 0.0
    %1192 = vmatpush1.msra.mxu0 %v977
    %1193 = vmatprep.subr.mxu0 0.0
    %1194 = vmatpush1.msra.mxu0 %v978
    %1195 = vmatprep.subr.mxu0 0.0
    %1196 = vmatpush1.msra.mxu0 %v979
    %1197 = vmatprep.subr.mxu0 0.0
    %1198 = vmatpush1.msra.mxu0 %v980
    %1199 = vmatprep.subr.mxu0 0.0
    %1200 = vmatpush1.msra.mxu0 %v981
    %1201 = vmatprep.subr.mxu0 0.0
    %1202 = vmatpush1.msra.mxu0 %v982
    %1203 = vmatprep.subr.mxu0 0.0
    %1204 = vmatpush1.msra.mxu0 %v983
    %1205 = vmatprep.subr.mxu0 0.0
    %1206 = vmatpush1.msra.mxu0 %v984
    %1207 = vmatprep.subr.mxu0 0.0
    %1208 = vmatpush1.msra.mxu0 %v985
    %1209 = vmatprep.subr.mxu0 0.0
    %1210 = vmatpush1.msra.mxu0 %v986
    %1211 = vmatprep.subr.mxu0 0.0
    %1212 = vmatpush1.msra.mxu0 %v987
    %1213 = vmatprep.subr.mxu0 0.0
    %1214 = vmatpush1.msra.mxu0 %v988
    %1215 = vmatprep.subr.mxu0 0.0
    %1216 = vmatpush1.msra.mxu0 %v989
    %1217 = vmatprep.subr.mxu0 0.0
    %1218 = vmatpush1.msra.mxu0 %v990
    %1219 = vmatprep.subr.mxu0 0.0
    %1220 = vmatpush1.msra.mxu0 %v991
    %1221 = vmatprep.subr.mxu0 0.0
    %1222 = vmatpush1.msra.mxu0 %v992
    %1223 = vmatprep.subr.mxu0 0.0
    %1224 = vmatpush1.msra.mxu0 %v993
    %1225 = vmatprep.subr.mxu0 0.0
    %1226 = vmatpush1.msra.mxu0 %v994
    %1227 = vmatprep.subr.mxu0 0.0
    %1228 = vmatpush1.msra.mxu0 %v995
    %1229 = vmatprep.subr.mxu0 0.0
    %1230 = vmatpush1.msra.mxu0 %v996
    %1231 = vmatprep.subr.mxu0 0.0
    %1232 = vmatpush1.msra.mxu0 %v997
    %1233 = vmatprep.subr.mxu0 0.0
    %1234 = vmatpush1.msra.mxu0 %v998
    %1235 = vmatprep.mubr.f32.mxu0 %v75
    %1236 = vmatmul.mubr.f32.gmra.mrb[0].mxu0 %v74
    %v1237 = vpop.f32.mrb[0].mxu0
    %v1238 = vadd.f32 %v1168, %v1237
    %v1239 = vpop.f32.mrb[0].mxu0
    %1240 = vdwg.mxu0
    %1241 = vmatprep.subr.mxu0 0.0
    %1242 = vmatpush1.msra.mxu0 %v999
    %1243 = vmatprep.subr.mxu0 0.0
    %1244 = vmatpush1.msra.mxu0 %v1000
    %1245 = vmatprep.subr.mxu0 0.0
    %1246 = vmatpush1.msra.mxu0 %v1001
    %1247 = vmatprep.subr.mxu0 0.0
    %1248 = vmatpush1.msra.mxu0 %v1002
    %1249 = vmatprep.subr.mxu0 0.0
    %1250 = vmatpush1.msra.mxu0 %v1003
    %1251 = vmatprep.subr.mxu0 0.0
    %1252 = vmatpush1.msra.mxu0 %v1004
    %1253 = vmatprep.subr.mxu0 0.0
    %1254 = vmatpush1.msra.mxu0 %v1005
    %1255 = vmatprep.subr.mxu0 0.0
    %1256 = vmatpush1.msra.mxu0 %v1006
    %1257 = vmatprep.subr.mxu0 0.0
    %1258 = vmatpush1.msra.mxu0 %v1007
    %1259 = vmatprep.subr.mxu0 0.0
    %1260 = vmatpush1.msra.mxu0 %v1008
    %1261 = vmatprep.subr.mxu0 0.0
    %1262 = vmatpush1.msra.mxu0 %v1009
    %1263 = vmatprep.subr.mxu0 0.0
    %1264 = vmatpush1.msra.mxu0 %v1010
    %1265 = vmatprep.subr.mxu0 0.0
    %1266 = vmatpush1.msra.mxu0 %v1011
    %1267 = vmatprep.subr.mxu0 0.0
    %1268 = vmatpush1.msra.mxu0 %v1012
    %1269 = vmatprep.subr.mxu0 0.0
    %1270 = vmatpush1.msra.mxu0 %v1013
    %1271 = vmatprep.subr.mxu0 0.0
    %1272 = vmatpush1.msra.mxu0 %v1014
    %1273 = vmatprep.subr.mxu0 0.0
    %1274 = vmatpush1.msra.mxu0 %v1015
    %1275 = vmatprep.subr.mxu0 0.0
    %1276 = vmatpush1.msra.mxu0 %v1016
    %1277 = vmatprep.subr.mxu0 0.0
    %1278 = vmatpush1.msra.mxu0 %v1017
    %1279 = vmatprep.subr.mxu0 0.0
    %1280 = vmatpush1.msra.mxu0 %v1018
    %1281 = vmatprep.subr.mxu0 0.0
    %1282 = vmatpush1.msra.mxu0 %v1019
    %1283 = vmatprep.subr.mxu0 0.0
    %1284 = vmatpush1.msra.mxu0 %v1020
    %1285 = vmatprep.subr.mxu0 0.0
    %1286 = vmatpush1.msra.mxu0 %v1021
    %1287 = vmatprep.subr.mxu0 0.0
    %1288 = vmatpush1.msra.mxu0 %v1022
    %1289 = vmatprep.subr.mxu0 0.0
    %1290 = vmatpush1.msra.mxu0 %v1023
    %1291 = vmatprep.subr.mxu0 0.0
    %1292 = vmatpush1.msra.mxu0 %v1024
    %1293 = vmatprep.subr.mxu0 0.0
    %1294 = vmatpush1.msra.mxu0 %v1025
    %1295 = vmatprep.subr.mxu0 0.0
    %1296 = vmatpush1.msra.mxu0 %v1026
    %1297 = vmatprep.subr.mxu0 0.0
    %1298 = vmatpush1.msra.mxu0 %v1027
    %1299 = vmatprep.subr.mxu0 0.0
    %1300 = vmatpush1.msra.mxu0 %v1028
    %1301 = vmatprep.subr.mxu0 0.0
    %1302 = vmatpush1.msra.mxu0 %v1029
    %1303 = vmatprep.subr.mxu0 0.0
    %1304 = vmatpush1.msra.mxu0 %v1030
    %1305 = vmatprep.mubr.f32.mxu0 %v77
    %1306 = vmatmul.mubr.f32.gmra.mrb[0].mxu0 %v76
    %v1307 = vpop.f32.mrb[0].mxu0
    %v1308 = vadd.f32 %v1238, %v1307
    %v1309 = vpop.f32.mrb[0].mxu0
    %1310 = vdwg.mxu0
    %1311 = vmatprep.subr.mxu0 0.0
    %1312 = vmatpush1.msra.mxu0 %v887
    %1313 = vmatprep.subr.mxu0 0.0
    %1314 = vmatpush1.msra.mxu0 %v888
    %1315 = vmatprep.subr.mxu0 0.0
    %1316 = vmatpush1.msra.mxu0 %v889
    %1317 = vmatprep.subr.mxu0 0.0
    %1318 = vmatpush1.msra.mxu0 %v890
    %1319 = vmatprep.subr.mxu0 0.0
    %1320 = vmatpush1.msra.mxu0 %v891
    %1321 = vmatprep.subr.mxu0 0.0
    %1322 = vmatpush1.msra.mxu0 %v892
    %1323 = vmatprep.subr.mxu0 0.0
    %1324 = vmatpush1.msra.mxu0 %v893
    %1325 = vmatprep.subr.mxu0 0.0
    %1326 = vmatpush1.msra.mxu0 %v894
    %1327 = vmatprep.subr.mxu0 0.0
    %1328 = vmatpush1.msra.mxu0 %v895
    %1329 = vmatprep.subr.mxu0 0.0
    %1330 = vmatpush1.msra.mxu0 %v896
    %1331 = vmatprep.subr.mxu0 0.0
    %1332 = vmatpush1.msra.mxu0 %v897
    %1333 = vmatprep.subr.mxu0 0.0
    %1334 = vmatpush1.msra.mxu0 %v898
    %1335 = vmatprep.subr.mxu0 0.0
    %1336 = vmatpush1.msra.mxu0 %v899
    %1337 = vmatprep.subr.mxu0 0.0
    %1338 = vmatpush1.msra.mxu0 %v900
    %1339 = vmatprep.subr.mxu0 0.0
    %1340 = vmatpush1.msra.mxu0 %v901
    %1341 = vmatprep.subr.mxu0 0.0
    %1342 = vmatpush1.msra.mxu0 %v902
    %1343 = vmatprep.subr.mxu0 0.0
    %1344 = vmatpush1.msra.mxu0 0.0
    %1345 = vmatprep.subr.mxu0 0.0
    %1346 = vmatpush1.msra.mxu0 0.0
    %1347 = vmatprep.subr.mxu0 0.0
    %1348 = vmatpush1.msra.mxu0 0.0
    %1349 = vmatprep.subr.mxu0 0.0
    %1350 = vmatpush1.msra.mxu0 0.0
    %1351 = vmatprep.subr.mxu0 0.0
    %1352 = vmatpush1.msra.mxu0 0.0
    %1353 = vmatprep.subr.mxu0 0.0
    %1354 = vmatpush1.msra.mxu0 0.0
    %1355 = vmatprep.subr.mxu0 0.0
    %1356 = vmatpush1.msra.mxu0 0.0
    %1357 = vmatprep.subr.mxu0 0.0
    %1358 = vmatpush1.msra.mxu0 0.0
    %1359 = vmatprep.subr.mxu0 0.0
    %1360 = vmatpush1.msra.mxu0 0.0
    %1361 = vmatprep.subr.mxu0 0.0
    %1362 = vmatpush1.msra.mxu0 0.0
    %1363 = vmatprep.subr.mxu0 0.0
    %1364 = vmatpush1.msra.mxu0 0.0
    %1365 = vmatprep.subr.mxu0 0.0
    %1366 = vmatpush1.msra.mxu0 0.0
    %1367 = vmatprep.subr.mxu0 0.0
    %1368 = vmatpush1.msra.mxu0 0.0
    %1369 = vmatprep.subr.mxu0 0.0
    %1370 = vmatpush1.msra.mxu0 0.0
    %1371 = vmatprep.subr.mxu0 0.0
    %1372 = vmatpush1.msra.mxu0 0.0
    %1373 = vmatprep.subr.mxu0 0.0
    %1374 = vmatpush1.msra.mxu0 0.0
    %1375 = vmatprep.mubr.f32.mxu0 0.0
    %1376 = vmatmul.mubr.f32.gmra.mrb[0].mxu0 %v886
    %v1377 = vpop.f32.mrb[0].mxu0
    %v1378 = vadd.f32 %v1308, %v1377
    %v1379 = vpop.f32.mrb[0].mxu0
    %1380 = vdwg.mxu0
    %v1381 = vld [vmem:[%s11] sm:$0x1]
    %v1383 = vlaneseq
    %v1384 = vshrl.u32 %v1383, 7
    %v1385 = vsub.s32 0, %v1384
    %v1386 = vrot.slane %v1381, %v1385
    %v1388 = vadd.f32 %v1378, %v1386
    %1389 = vst [vmem:[#allocation7] sm:$0xff] %v1388
    // Predicated region
    $region58: #{fcnet_forward.1} parent=1 // pred_check
      _
    $region59: #{fcnet_forward.1} parent=1 // pred_check_branch
      %1391 = sbr.rel (0) target = $region61
    $region60: #{fcnet_forward.1} parent=1 // pred_region
      %s1393 = ssub.s32 128, 128
      %1394 = vsyncadd [#allocation4], %s1393
      %s1396 = sshll.u32 [#allocation7], 4
      %s1397 = int_to_ptr.vmem [resolvable:$true] %s1396
      %1399 = dma.vmem_to_hbm [thread:$0]  %s1397, 128, %s12, [#allocation4]
    $region61: #{fcnet_forward.1} parent=1 // pred_fallthru
      _
    // Predicated region
    $region62: #{fcnet_forward.1} parent=1 // pred_check
      _
    $region63: #{fcnet_forward.1} parent=1 // pred_check_branch
      %1401 = sbr.rel (0) target = $region65
    $region64: #{fcnet_forward.1} parent=1 // pred_region
      %1402 = dma.done [#allocation4], 128
    $region65: #{fcnet_forward.1} parent=1 // pred_fallthru
      _
    %1403 = vsyncpa [#allocation3], 1
    %1404 = vsyncpa [#allocation6], 1
    %1405 = vsyncpa [#allocation4], 1

</llo_original>
